<compile_context>
chip_gen: v7x
topology: tpu7x:2x2x1
jax: 0.10.0
libtpu: 0.0.40
codegen_flags: <defaults>
</compile_context>

<pallas_src>
import jax
import jax.numpy as jnp
from jax.experimental import pallas as pl
from jax.experimental.pallas import tpu as pltpu


# ------------------------------------------------------------------
# Fused kernel: bidirectional GRU (direction-fused recurrence) + attention
# ------------------------------------------------------------------
def _word_encoder_kernel(x_ref, wih_ref, whh_ref, b_ref, bhn_ref,
                         w1_ref, b1_ref, w2_ref,
                         sent_ref, lasth_ref, alpha_ref):
    TB, E = x_ref.shape          # time-major rows: row = t*B + b
    H2 = whh_ref.shape[0]        # 2H
    H = H2 // 2
    G = whh_ref.shape[1]         # 6H
    B = sent_ref.shape[0]
    T = TB // B

    # ---- hoisted, direction-fused input projection: ONE matmul over T*B rows.
    # b_ref already folds b_ih (all gates) + b_hh (r,z gates only).
    xp = (jnp.dot(x_ref[...], wih_ref[...],
                  preferred_element_type=jnp.float32) + b_ref[...])      # [T*B, 6H]

    # Constant lane masks (hoisted out of the loop).
    col = jax.lax.broadcasted_iota(jnp.int32, (B, G), 1)
    fwd_cols = (col % (2 * H)) < H            # even H-blocks = forward gates
    lane = jax.lax.broadcasted_iota(jnp.int32, (B, H2), 1)
    fwd_half = lane < H                        # first half of h_cat = forward

    whh = whh_ref[...]                         # [2H, 6H] block-diag by direction
    bhn = bhn_ref[...]                         # [1, 2H] = [b_hn_f | b_hn_b]

    # ---- recurrence: both directions carried in one [B, 2H] state ----------
    # Per step: 1 MXU matmul + 1 sigmoid(4H) + 1 tanh(2H) + blend. T is small
    # and static -> fully unrolled; only h @ W_hh is on the sequential path.
    h_cat = jnp.zeros((B, H2), jnp.float32)
    h_hist = []
    for t in range(T):
        # forward consumes time t, backward consumes time T-1-t (static slices,
        # not data-dependent -> off the critical path).
        xp_t = jnp.where(fwd_cols,
                         xp[t * B:(t + 1) * B],
                         xp[(T - 1 - t) * B:(T - t) * B])                # [B, 6H]
        gh = jnp.dot(h_cat, whh, preferred_element_type=jnp.float32)    # [B, 6H]
        rz = jax.nn.sigmoid(xp_t[:, :4 * H] + gh[:, :4 * H])            # [B, 4H]
        r = rz[:, :H2]                                                   # [r_f|r_b]
        z = rz[:, H2:]                                                   # [z_f|z_b]
        n = jnp.tanh(xp_t[:, 4 * H:] + r * (gh[:, 4 * H:] + bhn))       # [n_f|n_b]
        h_cat = (1.0 - z) * n + z * h_cat
        h_hist.append(h_cat)

    # PyTorch last_hidden_state layout: [num_directions, B, H]
    lasth_ref[0] = h_hist[T - 1][:, :H]
    lasth_ref[1] = h_hist[T - 1][:, H:]

    # ---- GRU output sequence, assembled once in registers (time-major). ----
    # fwd output at time t = h_hist[t][:, :H]; bwd output at time t =
    # h_hist[T-1-t][:, H:]. Lane positions already match -> a select, no shuffles.
    hs_flat = jnp.concatenate(
        [jnp.where(fwd_half, h_hist[t], h_hist[T - 1 - t]) for t in range(T)],
        axis=0)                                                          # [T*B, 2H]

    # ---- attention: softmax over T (time-major -> reduce along axis 0) -----
    u = jnp.tanh(jnp.dot(hs_flat, w1_ref[...],
                         preferred_element_type=jnp.float32) + b1_ref[...])
    scores = jnp.dot(u, w2_ref[...], preferred_element_type=jnp.float32)
    scores3 = scores.reshape(T, B, H2)
    hs3 = hs_flat.reshape(T, B, H2)
    m = jnp.max(scores3, axis=0, keepdims=True)
    e = jnp.exp(scores3 - m)
    denom = jnp.sum(e, axis=0, keepdims=True)
    alphas = e / denom                       # exact divide (off critical path)
    alpha_ref[...] = alphas                  # [T, B, 2H]; wrapper transposes
    sent_ref[...] = jnp.sum(alphas * hs3, axis=0)                        # [B, 2H]


def word_encoder_pallas(x, kp):
    """x: [B, T, E] f32; kp: packed/fused kernel params.

    Returns (sentence [B,2H], last_h [2,B,H], alphas [B,T,2H])."""
    B, T, E = x.shape
    H2 = kp['whh_comb'].shape[0]
    H = H2 // 2
    # Layout plumbing done here (outside the kernel): time-major 2-D x, so the
    # kernel never regroups sublanes internally.
    x_tm = jnp.transpose(x, (1, 0, 2)).reshape(T * B, E)
    sent, last_h, alphas_tm = pl.pallas_call(
        _word_encoder_kernel,
        out_shape=(
            jax.ShapeDtypeStruct((B, H2), jnp.float32),      # sentence
            jax.ShapeDtypeStruct((2, B, H), jnp.float32),    # last hidden state
            jax.ShapeDtypeStruct((T, B, H2), jnp.float32),   # alphas (time-major)
        ),
    )(x_tm, kp['wih_comb'], kp['whh_comb'], kp['b_comb'], kp['bhh_n'],
      kp['w1'], kp['b1'], kp['w2'])
    alphas = jnp.transpose(alphas_tm, (1, 0, 2))             # [B, T, 2H]
    return sent, last_h, alphas


# ------------------------------------------------------------------
# word_encoder.forward
# ------------------------------------------------------------------
def word_encoder_forward(inputs_embedded, hid_state, packed_params):
    """inputs_embedded: [B, T, E]; hid_state accepted but unused (as in PyTorch)."""
    del hid_state  # the PyTorch forward never uses it
    x = inputs_embedded.astype(jnp.float32)
    sentence, last_h, alphas = word_encoder_pallas(x, packed_params)
    return sentence[None, ...], [last_h, alphas]


# ------------------------------------------------------------------
# Parameter init (standard per-direction layout) + kernel-side packing
# ------------------------------------------------------------------
def init_params(key, E, H):
    D = 2 * H
    ks = jax.random.split(key, 7)
    kg = 1.0 / jnp.sqrt(jnp.float32(H))
    kl = 1.0 / jnp.sqrt(jnp.float32(D))
    return dict(
        # GRU weights transposed for x @ W, gates (r,z,n) fused along output dim.
        wih=jax.random.uniform(ks[0], (2, E, 3 * H), jnp.float32, -kg, kg),
        whh=jax.random.uniform(ks[1], (2, H, 3 * H), jnp.float32, -kg, kg),
        bih=jax.random.uniform(ks[2], (2, 1, 3 * H), jnp.float32, -kg, kg),
        bhh=jax.random.uniform(ks[3], (2, 1, 3 * H), jnp.float32, -kg, kg),
        # Attention: layer1 (with bias) and layer2 (no bias), stored as [in, out]
        w1=jax.random.uniform(ks[4], (D, D), jnp.float32, -kl, kl),
        b1=jax.random.uniform(ks[5], (1, D), jnp.float32, -kl, kl),
        w2=jax.random.uniform(ks[6], (D, D), jnp.float32, -kl, kl),
    )


def pack_params(p):
    """Build the direction-fused operands the kernel consumes.

    Fused gate-column order: [r_f, r_b, z_f, z_b, n_f, n_b] (6H columns)."""
    E = p['wih'].shape[1]
    H = p['whh'].shape[1]

    def gate(w, d, g):                     # column block g (0=r,1=z,2=n), dir d
        return w[d][..., g * H:(g + 1) * H]

    wih_comb = jnp.concatenate(
        [gate(p['wih'], 0, 0), gate(p['wih'], 1, 0),
         gate(p['wih'], 0, 1), gate(p['wih'], 1, 1),
         gate(p['wih'], 0, 2), gate(p['wih'], 1, 2)], axis=-1)          # [E, 6H]

    zeros = jnp.zeros((H, H), jnp.float32)

    def blk(d, g):                         # block-diagonal column for W_hh
        w = gate(p['whh'], d, g)                                        # [H, H]
        return jnp.concatenate([w, zeros] if d == 0 else [zeros, w], axis=0)

    whh_comb = jnp.concatenate(
        [blk(0, 0), blk(1, 0), blk(0, 1), blk(1, 1), blk(0, 2), blk(1, 2)],
        axis=-1)                                                        # [2H, 6H]

    # bias: b_ih (all gates) + b_hh (r,z only) folded together; b_hn separate
    b_comb = jnp.concatenate(
        [gate(p['bih'], 0, 0) + gate(p['bhh'], 0, 0),
         gate(p['bih'], 1, 0) + gate(p['bhh'], 1, 0),
         gate(p['bih'], 0, 1) + gate(p['bhh'], 0, 1),
         gate(p['bih'], 1, 1) + gate(p['bhh'], 1, 1),
         gate(p['bih'], 0, 2), gate(p['bih'], 1, 2)], axis=-1)          # [1, 6H]
    bhh_n = jnp.concatenate([gate(p['bhh'], 0, 2), gate(p['bhh'], 1, 2)],
                            axis=-1)                                    # [1, 2H]

    return dict(wih_comb=wih_comb, whh_comb=whh_comb, b_comb=b_comb,
                bhh_n=bhh_n, w1=p['w1'], b1=p['b1'], w2=p['w2'])


# ------------------------------------------------------------------
# Pure-JAX reference (standard per-direction formulation, for correctness)
# ------------------------------------------------------------------
def reference_forward(inputs_embedded, params):
    x = inputs_embedded.astype(jnp.float32)        # [B, T, E]
    B, T, E = x.shape
    H = params['whh'].shape[1]

    def cell(x_t, h, d):
        gi = x_t @ params['wih'][d] + params['bih'][d]
        gh = h @ params['whh'][d] + params['bhh'][d]
        r = jax.nn.sigmoid(gi[:, :H] + gh[:, :H])
        z = jax.nn.sigmoid(gi[:, H:2 * H] + gh[:, H:2 * H])
        n = jnp.tanh(gi[:, 2 * H:] + r * gh[:, 2 * H:])
        return (1.0 - z) * n + z * h

    def run_dir(xs_tbe, d):
        def step(h, x_t):
            h_new = cell(x_t, h, d)
            return h_new, h_new
        h0 = jnp.zeros((B, H), jnp.float32)
        hT, ys = jax.lax.scan(step, h0, xs_tbe)
        return ys, hT

    x_tbe = jnp.transpose(x, (1, 0, 2))
    ys_f, hT_f = run_dir(x_tbe, 0)
    ys_b, hT_b = run_dir(x_tbe[::-1], 1)
    ys_b = ys_b[::-1]
    hs = jnp.transpose(jnp.concatenate([ys_f, ys_b], -1), (1, 0, 2))  # [B, T, 2H]
    last_h = jnp.stack([hT_f, hT_b], axis=0)

    u = jnp.tanh(hs @ params['w1'] + params['b1'])
    alphas = jax.nn.softmax(u @ params['w2'], axis=1)
    sentence = jnp.sum(alphas * hs, axis=1)
    return sentence[None, ...], [last_h, alphas]


if __name__ == "__main__":
    B, T, E, H = 4, 8, 32, 32
    key = jax.random.PRNGKey(0)
    k_x, k_h, k_p = jax.random.split(key, 3)

    inputs_embedded = jax.random.normal(k_x, (B, T, E), jnp.float32)
    hid_state = jax.random.normal(k_h, (2, B, H), jnp.float32)  # ignored (as in PyTorch)
    params = init_params(k_p, E, H)
    packed = pack_params(params)

    out_att, (last_h, alphas) = word_encoder_forward(inputs_embedded, hid_state, packed)
    jax.block_until_ready((out_att, last_h, alphas))

    # shape checks against the PyTorch contract
    assert out_att.shape == (1, B, 2 * H)
    assert last_h.shape == (2, B, H)
    assert alphas.shape == (B, T, 2 * H)

    # numerical check vs pure-JAX reference (standard, unfused formulation)
    ref_att, (ref_last_h, ref_alphas) = reference_forward(inputs_embedded, params)
    assert jnp.allclose(out_att, ref_att, atol=5e-3, rtol=5e-3)
    assert jnp.allclose(last_h, ref_last_h, atol=5e-3, rtol=5e-3)
    assert jnp.allclose(alphas, ref_alphas, atol=5e-3, rtol=5e-3)

    print("KERNEL_OK")
</pallas_src>

<mosaic_0001>
module attributes {stable_mosaic.version = 11 : i64} {
  func.func @_word_encoder_kernel(%arg0: memref<32x32xf32, #tpu.memory_space<vmem>>, %arg1: memref<32x192xf32, #tpu.memory_space<vmem>>, %arg2: memref<64x192xf32, #tpu.memory_space<vmem>>, %arg3: memref<1x192xf32, #tpu.memory_space<vmem>>, %arg4: memref<1x64xf32, #tpu.memory_space<vmem>>, %arg5: memref<64x64xf32, #tpu.memory_space<vmem>>, %arg6: memref<1x64xf32, #tpu.memory_space<vmem>>, %arg7: memref<64x64xf32, #tpu.memory_space<vmem>>, %arg8: memref<4x64xf32, #tpu.memory_space<vmem>>, %arg9: memref<2x4x32xf32, #tpu.memory_space<vmem>>, %arg10: memref<8x4x64xf32, #tpu.memory_space<vmem>>) attributes {dimension_semantics = [], scalar_prefetch = 0 : i64, scratch_operands = 0 : i64, tpu.core_type = #tpu.core_type<tc>} {
    %c0 = arith.constant 0 : index
    %c0_0 = arith.constant 0 : index
    %0 = vector.load %arg0[%c0, %c0_0] : memref<32x32xf32, #tpu.memory_space<vmem>>, vector<32x32xf32>
    %c0_1 = arith.constant 0 : index
    %c0_2 = arith.constant 0 : index
    %1 = vector.load %arg1[%c0_1, %c0_2] : memref<32x192xf32, #tpu.memory_space<vmem>>, vector<32x192xf32>
    %cst = arith.constant dense<0.000000e+00> : vector<32x192xf32>
    %2 = tpu.matmul %0, %1, %cst {dimension_numbers = #tpu.dot_dimension_numbers<[1], [0], [0], [1], [0, 0, 1, 1], [], []>} : vector<32x32xf32>, vector<32x192xf32>, vector<32x192xf32> -> vector<32x192xf32>
    %c0_3 = arith.constant 0 : index
    %c0_4 = arith.constant 0 : index
    %3 = vector.load %arg3[%c0_3, %c0_4] : memref<1x192xf32, #tpu.memory_space<vmem>>, vector<1x192xf32>
    %4 = vector.broadcast %3 : vector<1x192xf32> to vector<32x192xf32>
    %5 = arith.addf %2, %4 : vector<32x192xf32>
    %6 = tpu.iota {dimensions = array<i32: 1>} : vector<4x192xi32>
    %c64_i32 = arith.constant 64 : i32
    %c0_i32 = arith.constant 0 : i32
    %7 = arith.cmpi eq, %c64_i32, %c0_i32 : i32
    %c1_i32 = arith.constant 1 : i32
    %8 = arith.select %7, %c1_i32, %c64_i32 : i32
    %9 = vector.broadcast %8 : i32 to vector<4x192xi32>
    %10 = arith.remsi %6, %9 : vector<4x192xi32>
    %c0_i32_5 = arith.constant 0 : i32
    %11 = vector.broadcast %c0_i32_5 : i32 to vector<4x192xi32>
    %12 = arith.cmpi ne, %10, %11 : vector<4x192xi32>
    %c0_i32_6 = arith.constant 0 : i32
    %13 = vector.broadcast %c0_i32_6 : i32 to vector<4x192xi32>
    %14 = arith.cmpi slt, %10, %13 : vector<4x192xi32>
    %c0_i32_7 = arith.constant 0 : i32
    %15 = arith.cmpi slt, %8, %c0_i32_7 : i32
    %16 = vector.broadcast %15 : i1 to vector<4x192xi1>
    %17 = vector.broadcast %16 : vector<4x192xi1> to vector<4x192xi1>
    %18 = arith.xori %14, %17 : vector<4x192xi1>
    %19 = arith.andi %18, %12 : vector<4x192xi1>
    %20 = vector.broadcast %8 : i32 to vector<4x192xi32>
    %21 = arith.addi %10, %20 : vector<4x192xi32>
    %22 = arith.select %19, %21, %10 : vector<4x192xi1>, vector<4x192xi32>
    %c32_i32 = arith.constant 32 : i32
    %23 = vector.broadcast %c32_i32 : i32 to vector<4x192xi32>
    %24 = arith.cmpi slt, %22, %23 : vector<4x192xi32>
    %25 = tpu.iota {dimensions = array<i32: 1>} : vector<4x64xi32>
    %c32_i32_8 = arith.constant 32 : i32
    %26 = vector.broadcast %c32_i32_8 : i32 to vector<4x64xi32>
    %27 = arith.cmpi slt, %25, %26 : vector<4x64xi32>
    %c0_9 = arith.constant 0 : index
    %c0_10 = arith.constant 0 : index
    %28 = vector.load %arg2[%c0_9, %c0_10] : memref<64x192xf32, #tpu.memory_space<vmem>>, vector<64x192xf32>
    %c0_11 = arith.constant 0 : index
    %c0_12 = arith.constant 0 : index
    %29 = vector.load %arg4[%c0_11, %c0_12] : memref<1x64xf32, #tpu.memory_space<vmem>>, vector<1x64xf32>
    %cst_13 = arith.constant 0.000000e+00 : f32
    %30 = vector.broadcast %cst_13 : f32 to vector<4x64xf32>
    %31 = vector.extract_strided_slice %5 {offsets = [0, 0], sizes = [4, 192], strides = [1, 1]} : vector<32x192xf32> to vector<4x192xf32>
    %32 = vector.extract_strided_slice %5 {offsets = [28, 0], sizes = [4, 192], strides = [1, 1]} : vector<32x192xf32> to vector<4x192xf32>
    %33 = arith.select %24, %31, %32 : vector<4x192xi1>, vector<4x192xf32>
    %cst_14 = arith.constant dense<0.000000e+00> : vector<4x192xf32>
    %34 = tpu.matmul %30, %28, %cst_14 {dimension_numbers = #tpu.dot_dimension_numbers<[1], [0], [0], [1], [0, 0, 1, 1], [], []>} : vector<4x64xf32>, vector<64x192xf32>, vector<4x192xf32> -> vector<4x192xf32>
    %35 = vector.extract_strided_slice %33 {offsets = [0, 0], sizes = [4, 128], strides = [1, 1]} : vector<4x192xf32> to vector<4x128xf32>
    %36 = vector.extract_strided_slice %34 {offsets = [0, 0], sizes = [4, 128], strides = [1, 1]} : vector<4x192xf32> to vector<4x128xf32>
    %37 = arith.addf %35, %36 : vector<4x128xf32>
    %38 = arith.negf %37 : vector<4x128xf32>
    %39 = math.exp %38 : vector<4x128xf32>
    %cst_15 = arith.constant 1.000000e+00 : f32
    %40 = vector.broadcast %cst_15 : f32 to vector<4x128xf32>
    %41 = arith.addf %40, %39 : vector<4x128xf32>
    %42 = arith.divf %40, %41 : vector<4x128xf32>
    %43 = vector.extract_strided_slice %42 {offsets = [0, 0], sizes = [4, 64], strides = [1, 1]} : vector<4x128xf32> to vector<4x64xf32>
    %44 = vector.extract_strided_slice %42 {offsets = [0, 64], sizes = [4, 64], strides = [1, 1]} : vector<4x128xf32> to vector<4x64xf32>
    %45 = vector.extract_strided_slice %33 {offsets = [0, 128], sizes = [4, 64], strides = [1, 1]} : vector<4x192xf32> to vector<4x64xf32>
    %46 = vector.extract_strided_slice %34 {offsets = [0, 128], sizes = [4, 64], strides = [1, 1]} : vector<4x192xf32> to vector<4x64xf32>
    %47 = vector.broadcast %29 : vector<1x64xf32> to vector<4x64xf32>
    %48 = arith.addf %46, %47 : vector<4x64xf32>
    %49 = arith.mulf %43, %48 : vector<4x64xf32>
    %50 = arith.addf %45, %49 : vector<4x64xf32>
    %51 = math.tanh %50 : vector<4x64xf32>
    %cst_16 = arith.constant 1.000000e+00 : f32
    %52 = vector.broadcast %cst_16 : f32 to vector<4x64xf32>
    %53 = arith.subf %52, %44 : vector<4x64xf32>
    %54 = arith.mulf %53, %51 : vector<4x64xf32>
    %55 = arith.mulf %44, %30 : vector<4x64xf32>
    %56 = arith.addf %54, %55 : vector<4x64xf32>
    %57 = vector.extract_strided_slice %5 {offsets = [4, 0], sizes = [4, 192], strides = [1, 1]} : vector<32x192xf32> to vector<4x192xf32>
    %58 = vector.extract_strided_slice %5 {offsets = [24, 0], sizes = [4, 192], strides = [1, 1]} : vector<32x192xf32> to vector<4x192xf32>
    %59 = arith.select %24, %57, %58 : vector<4x192xi1>, vector<4x192xf32>
    %cst_17 = arith.constant dense<0.000000e+00> : vector<4x192xf32>
    %60 = tpu.matmul %56, %28, %cst_17 {dimension_numbers = #tpu.dot_dimension_numbers<[1], [0], [0], [1], [0, 0, 1, 1], [], []>} : vector<4x64xf32>, vector<64x192xf32>, vector<4x192xf32> -> vector<4x192xf32>
    %61 = vector.extract_strided_slice %59 {offsets = [0, 0], sizes = [4, 128], strides = [1, 1]} : vector<4x192xf32> to vector<4x128xf32>
    %62 = vector.extract_strided_slice %60 {offsets = [0, 0], sizes = [4, 128], strides = [1, 1]} : vector<4x192xf32> to vector<4x128xf32>
    %63 = arith.addf %61, %62 : vector<4x128xf32>
    %64 = arith.negf %63 : vector<4x128xf32>
    %65 = math.exp %64 : vector<4x128xf32>
    %cst_18 = arith.constant 1.000000e+00 : f32
    %66 = vector.broadcast %cst_18 : f32 to vector<4x128xf32>
    %67 = arith.addf %66, %65 : vector<4x128xf32>
    %68 = arith.divf %66, %67 : vector<4x128xf32>
    %69 = vector.extract_strided_slice %68 {offsets = [0, 0], sizes = [4, 64], strides = [1, 1]} : vector<4x128xf32> to vector<4x64xf32>
    %70 = vector.extract_strided_slice %68 {offsets = [0, 64], sizes = [4, 64], strides = [1, 1]} : vector<4x128xf32> to vector<4x64xf32>
    %71 = vector.extract_strided_slice %59 {offsets = [0, 128], sizes = [4, 64], strides = [1, 1]} : vector<4x192xf32> to vector<4x64xf32>
    %72 = vector.extract_strided_slice %60 {offsets = [0, 128], sizes = [4, 64], strides = [1, 1]} : vector<4x192xf32> to vector<4x64xf32>
    %73 = vector.broadcast %29 : vector<1x64xf32> to vector<4x64xf32>
    %74 = arith.addf %72, %73 : vector<4x64xf32>
    %75 = arith.mulf %69, %74 : vector<4x64xf32>
    %76 = arith.addf %71, %75 : vector<4x64xf32>
    %77 = math.tanh %76 : vector<4x64xf32>
    %cst_19 = arith.constant 1.000000e+00 : f32
    %78 = vector.broadcast %cst_19 : f32 to vector<4x64xf32>
    %79 = arith.subf %78, %70 : vector<4x64xf32>
    %80 = arith.mulf %79, %77 : vector<4x64xf32>
    %81 = arith.mulf %70, %56 : vector<4x64xf32>
    %82 = arith.addf %80, %81 : vector<4x64xf32>
    %83 = vector.extract_strided_slice %5 {offsets = [8, 0], sizes = [4, 192], strides = [1, 1]} : vector<32x192xf32> to vector<4x192xf32>
    %84 = vector.extract_strided_slice %5 {offsets = [20, 0], sizes = [4, 192], strides = [1, 1]} : vector<32x192xf32> to vector<4x192xf32>
    %85 = arith.select %24, %83, %84 : vector<4x192xi1>, vector<4x192xf32>
    %cst_20 = arith.constant dense<0.000000e+00> : vector<4x192xf32>
    %86 = tpu.matmul %82, %28, %cst_20 {dimension_numbers = #tpu.dot_dimension_numbers<[1], [0], [0], [1], [0, 0, 1, 1], [], []>} : vector<4x64xf32>, vector<64x192xf32>, vector<4x192xf32> -> vector<4x192xf32>
    %87 = vector.extract_strided_slice %85 {offsets = [0, 0], sizes = [4, 128], strides = [1, 1]} : vector<4x192xf32> to vector<4x128xf32>
    %88 = vector.extract_strided_slice %86 {offsets = [0, 0], sizes = [4, 128], strides = [1, 1]} : vector<4x192xf32> to vector<4x128xf32>
    %89 = arith.addf %87, %88 : vector<4x128xf32>
    %90 = arith.negf %89 : vector<4x128xf32>
    %91 = math.exp %90 : vector<4x128xf32>
    %cst_21 = arith.constant 1.000000e+00 : f32
    %92 = vector.broadcast %cst_21 : f32 to vector<4x128xf32>
    %93 = arith.addf %92, %91 : vector<4x128xf32>
    %94 = arith.divf %92, %93 : vector<4x128xf32>
    %95 = vector.extract_strided_slice %94 {offsets = [0, 0], sizes = [4, 64], strides = [1, 1]} : vector<4x128xf32> to vector<4x64xf32>
    %96 = vector.extract_strided_slice %94 {offsets = [0, 64], sizes = [4, 64], strides = [1, 1]} : vector<4x128xf32> to vector<4x64xf32>
    %97 = vector.extract_strided_slice %85 {offsets = [0, 128], sizes = [4, 64], strides = [1, 1]} : vector<4x192xf32> to vector<4x64xf32>
    %98 = vector.extract_strided_slice %86 {offsets = [0, 128], sizes = [4, 64], strides = [1, 1]} : vector<4x192xf32> to vector<4x64xf32>
    %99 = vector.broadcast %29 : vector<1x64xf32> to vector<4x64xf32>
    %100 = arith.addf %98, %99 : vector<4x64xf32>
    %101 = arith.mulf %95, %100 : vector<4x64xf32>
    %102 = arith.addf %97, %101 : vector<4x64xf32>
    %103 = math.tanh %102 : vector<4x64xf32>
    %cst_22 = arith.constant 1.000000e+00 : f32
    %104 = vector.broadcast %cst_22 : f32 to vector<4x64xf32>
    %105 = arith.subf %104, %96 : vector<4x64xf32>
    %106 = arith.mulf %105, %103 : vector<4x64xf32>
    %107 = arith.mulf %96, %82 : vector<4x64xf32>
    %108 = arith.addf %106, %107 : vector<4x64xf32>
    %109 = vector.extract_strided_slice %5 {offsets = [12, 0], sizes = [4, 192], strides = [1, 1]} : vector<32x192xf32> to vector<4x192xf32>
    %110 = vector.extract_strided_slice %5 {offsets = [16, 0], sizes = [4, 192], strides = [1, 1]} : vector<32x192xf32> to vector<4x192xf32>
    %111 = arith.select %24, %109, %110 : vector<4x192xi1>, vector<4x192xf32>
    %cst_23 = arith.constant dense<0.000000e+00> : vector<4x192xf32>
    %112 = tpu.matmul %108, %28, %cst_23 {dimension_numbers = #tpu.dot_dimension_numbers<[1], [0], [0], [1], [0, 0, 1, 1], [], []>} : vector<4x64xf32>, vector<64x192xf32>, vector<4x192xf32> -> vector<4x192xf32>
    %113 = vector.extract_strided_slice %111 {offsets = [0, 0], sizes = [4, 128], strides = [1, 1]} : vector<4x192xf32> to vector<4x128xf32>
    %114 = vector.extract_strided_slice %112 {offsets = [0, 0], sizes = [4, 128], strides = [1, 1]} : vector<4x192xf32> to vector<4x128xf32>
    %115 = arith.addf %113, %114 : vector<4x128xf32>
    %116 = arith.negf %115 : vector<4x128xf32>
    %117 = math.exp %116 : vector<4x128xf32>
    %cst_24 = arith.constant 1.000000e+00 : f32
    %118 = vector.broadcast %cst_24 : f32 to vector<4x128xf32>
    %119 = arith.addf %118, %117 : vector<4x128xf32>
    %120 = arith.divf %118, %119 : vector<4x128xf32>
    %121 = vector.extract_strided_slice %120 {offsets = [0, 0], sizes = [4, 64], strides = [1, 1]} : vector<4x128xf32> to vector<4x64xf32>
    %122 = vector.extract_strided_slice %120 {offsets = [0, 64], sizes = [4, 64], strides = [1, 1]} : vector<4x128xf32> to vector<4x64xf32>
    %123 = vector.extract_strided_slice %111 {offsets = [0, 128], sizes = [4, 64], strides = [1, 1]} : vector<4x192xf32> to vector<4x64xf32>
    %124 = vector.extract_strided_slice %112 {offsets = [0, 128], sizes = [4, 64], strides = [1, 1]} : vector<4x192xf32> to vector<4x64xf32>
    %125 = vector.broadcast %29 : vector<1x64xf32> to vector<4x64xf32>
    %126 = arith.addf %124, %125 : vector<4x64xf32>
    %127 = arith.mulf %121, %126 : vector<4x64xf32>
    %128 = arith.addf %123, %127 : vector<4x64xf32>
    %129 = math.tanh %128 : vector<4x64xf32>
    %cst_25 = arith.constant 1.000000e+00 : f32
    %130 = vector.broadcast %cst_25 : f32 to vector<4x64xf32>
    %131 = arith.subf %130, %122 : vector<4x64xf32>
    %132 = arith.mulf %131, %129 : vector<4x64xf32>
    %133 = arith.mulf %122, %108 : vector<4x64xf32>
    %134 = arith.addf %132, %133 : vector<4x64xf32>
    %135 = vector.extract_strided_slice %5 {offsets = [16, 0], sizes = [4, 192], strides = [1, 1]} : vector<32x192xf32> to vector<4x192xf32>
    %136 = vector.extract_strided_slice %5 {offsets = [12, 0], sizes = [4, 192], strides = [1, 1]} : vector<32x192xf32> to vector<4x192xf32>
    %137 = arith.select %24, %135, %136 : vector<4x192xi1>, vector<4x192xf32>
    %cst_26 = arith.constant dense<0.000000e+00> : vector<4x192xf32>
    %138 = tpu.matmul %134, %28, %cst_26 {dimension_numbers = #tpu.dot_dimension_numbers<[1], [0], [0], [1], [0, 0, 1, 1], [], []>} : vector<4x64xf32>, vector<64x192xf32>, vector<4x192xf32> -> vector<4x192xf32>
    %139 = vector.extract_strided_slice %137 {offsets = [0, 0], sizes = [4, 128], strides = [1, 1]} : vector<4x192xf32> to vector<4x128xf32>
    %140 = vector.extract_strided_slice %138 {offsets = [0, 0], sizes = [4, 128], strides = [1, 1]} : vector<4x192xf32> to vector<4x128xf32>
    %141 = arith.addf %139, %140 : vector<4x128xf32>
    %142 = arith.negf %141 : vector<4x128xf32>
    %143 = math.exp %142 : vector<4x128xf32>
    %cst_27 = arith.constant 1.000000e+00 : f32
    %144 = vector.broadcast %cst_27 : f32 to vector<4x128xf32>
    %145 = arith.addf %144, %143 : vector<4x128xf32>
    %146 = arith.divf %144, %145 : vector<4x128xf32>
    %147 = vector.extract_strided_slice %146 {offsets = [0, 0], sizes = [4, 64], strides = [1, 1]} : vector<4x128xf32> to vector<4x64xf32>
    %148 = vector.extract_strided_slice %146 {offsets = [0, 64], sizes = [4, 64], strides = [1, 1]} : vector<4x128xf32> to vector<4x64xf32>
    %149 = vector.extract_strided_slice %137 {offsets = [0, 128], sizes = [4, 64], strides = [1, 1]} : vector<4x192xf32> to vector<4x64xf32>
    %150 = vector.extract_strided_slice %138 {offsets = [0, 128], sizes = [4, 64], strides = [1, 1]} : vector<4x192xf32> to vector<4x64xf32>
    %151 = vector.broadcast %29 : vector<1x64xf32> to vector<4x64xf32>
    %152 = arith.addf %150, %151 : vector<4x64xf32>
    %153 = arith.mulf %147, %152 : vector<4x64xf32>
    %154 = arith.addf %149, %153 : vector<4x64xf32>
    %155 = math.tanh %154 : vector<4x64xf32>
    %cst_28 = arith.constant 1.000000e+00 : f32
    %156 = vector.broadcast %cst_28 : f32 to vector<4x64xf32>
    %157 = arith.subf %156, %148 : vector<4x64xf32>
    %158 = arith.mulf %157, %155 : vector<4x64xf32>
    %159 = arith.mulf %148, %134 : vector<4x64xf32>
    %160 = arith.addf %158, %159 : vector<4x64xf32>
    %161 = vector.extract_strided_slice %5 {offsets = [20, 0], sizes = [4, 192], strides = [1, 1]} : vector<32x192xf32> to vector<4x192xf32>
    %162 = vector.extract_strided_slice %5 {offsets = [8, 0], sizes = [4, 192], strides = [1, 1]} : vector<32x192xf32> to vector<4x192xf32>
    %163 = arith.select %24, %161, %162 : vector<4x192xi1>, vector<4x192xf32>
    %cst_29 = arith.constant dense<0.000000e+00> : vector<4x192xf32>
    %164 = tpu.matmul %160, %28, %cst_29 {dimension_numbers = #tpu.dot_dimension_numbers<[1], [0], [0], [1], [0, 0, 1, 1], [], []>} : vector<4x64xf32>, vector<64x192xf32>, vector<4x192xf32> -> vector<4x192xf32>
    %165 = vector.extract_strided_slice %163 {offsets = [0, 0], sizes = [4, 128], strides = [1, 1]} : vector<4x192xf32> to vector<4x128xf32>
    %166 = vector.extract_strided_slice %164 {offsets = [0, 0], sizes = [4, 128], strides = [1, 1]} : vector<4x192xf32> to vector<4x128xf32>
    %167 = arith.addf %165, %166 : vector<4x128xf32>
    %168 = arith.negf %167 : vector<4x128xf32>
    %169 = math.exp %168 : vector<4x128xf32>
    %cst_30 = arith.constant 1.000000e+00 : f32
    %170 = vector.broadcast %cst_30 : f32 to vector<4x128xf32>
    %171 = arith.addf %170, %169 : vector<4x128xf32>
    %172 = arith.divf %170, %171 : vector<4x128xf32>
    %173 = vector.extract_strided_slice %172 {offsets = [0, 0], sizes = [4, 64], strides = [1, 1]} : vector<4x128xf32> to vector<4x64xf32>
    %174 = vector.extract_strided_slice %172 {offsets = [0, 64], sizes = [4, 64], strides = [1, 1]} : vector<4x128xf32> to vector<4x64xf32>
    %175 = vector.extract_strided_slice %163 {offsets = [0, 128], sizes = [4, 64], strides = [1, 1]} : vector<4x192xf32> to vector<4x64xf32>
    %176 = vector.extract_strided_slice %164 {offsets = [0, 128], sizes = [4, 64], strides = [1, 1]} : vector<4x192xf32> to vector<4x64xf32>
    %177 = vector.broadcast %29 : vector<1x64xf32> to vector<4x64xf32>
    %178 = arith.addf %176, %177 : vector<4x64xf32>
    %179 = arith.mulf %173, %178 : vector<4x64xf32>
    %180 = arith.addf %175, %179 : vector<4x64xf32>
    %181 = math.tanh %180 : vector<4x64xf32>
    %cst_31 = arith.constant 1.000000e+00 : f32
    %182 = vector.broadcast %cst_31 : f32 to vector<4x64xf32>
    %183 = arith.subf %182, %174 : vector<4x64xf32>
    %184 = arith.mulf %183, %181 : vector<4x64xf32>
    %185 = arith.mulf %174, %160 : vector<4x64xf32>
    %186 = arith.addf %184, %185 : vector<4x64xf32>
    %187 = vector.extract_strided_slice %5 {offsets = [24, 0], sizes = [4, 192], strides = [1, 1]} : vector<32x192xf32> to vector<4x192xf32>
    %188 = vector.extract_strided_slice %5 {offsets = [4, 0], sizes = [4, 192], strides = [1, 1]} : vector<32x192xf32> to vector<4x192xf32>
    %189 = arith.select %24, %187, %188 : vector<4x192xi1>, vector<4x192xf32>
    %cst_32 = arith.constant dense<0.000000e+00> : vector<4x192xf32>
    %190 = tpu.matmul %186, %28, %cst_32 {dimension_numbers = #tpu.dot_dimension_numbers<[1], [0], [0], [1], [0, 0, 1, 1], [], []>} : vector<4x64xf32>, vector<64x192xf32>, vector<4x192xf32> -> vector<4x192xf32>
    %191 = vector.extract_strided_slice %189 {offsets = [0, 0], sizes = [4, 128], strides = [1, 1]} : vector<4x192xf32> to vector<4x128xf32>
    %192 = vector.extract_strided_slice %190 {offsets = [0, 0], sizes = [4, 128], strides = [1, 1]} : vector<4x192xf32> to vector<4x128xf32>
    %193 = arith.addf %191, %192 : vector<4x128xf32>
    %194 = arith.negf %193 : vector<4x128xf32>
    %195 = math.exp %194 : vector<4x128xf32>
    %cst_33 = arith.constant 1.000000e+00 : f32
    %196 = vector.broadcast %cst_33 : f32 to vector<4x128xf32>
    %197 = arith.addf %196, %195 : vector<4x128xf32>
    %198 = arith.divf %196, %197 : vector<4x128xf32>
    %199 = vector.extract_strided_slice %198 {offsets = [0, 0], sizes = [4, 64], strides = [1, 1]} : vector<4x128xf32> to vector<4x64xf32>
    %200 = vector.extract_strided_slice %198 {offsets = [0, 64], sizes = [4, 64], strides = [1, 1]} : vector<4x128xf32> to vector<4x64xf32>
    %201 = vector.extract_strided_slice %189 {offsets = [0, 128], sizes = [4, 64], strides = [1, 1]} : vector<4x192xf32> to vector<4x64xf32>
    %202 = vector.extract_strided_slice %190 {offsets = [0, 128], sizes = [4, 64], strides = [1, 1]} : vector<4x192xf32> to vector<4x64xf32>
    %203 = vector.broadcast %29 : vector<1x64xf32> to vector<4x64xf32>
    %204 = arith.addf %202, %203 : vector<4x64xf32>
    %205 = arith.mulf %199, %204 : vector<4x64xf32>
    %206 = arith.addf %201, %205 : vector<4x64xf32>
    %207 = math.tanh %206 : vector<4x64xf32>
    %cst_34 = arith.constant 1.000000e+00 : f32
    %208 = vector.broadcast %cst_34 : f32 to vector<4x64xf32>
    %209 = arith.subf %208, %200 : vector<4x64xf32>
    %210 = arith.mulf %209, %207 : vector<4x64xf32>
    %211 = arith.mulf %200, %186 : vector<4x64xf32>
    %212 = arith.addf %210, %211 : vector<4x64xf32>
    %213 = vector.extract_strided_slice %5 {offsets = [28, 0], sizes = [4, 192], strides = [1, 1]} : vector<32x192xf32> to vector<4x192xf32>
    %214 = vector.extract_strided_slice %5 {offsets = [0, 0], sizes = [4, 192], strides = [1, 1]} : vector<32x192xf32> to vector<4x192xf32>
    %215 = arith.select %24, %213, %214 : vector<4x192xi1>, vector<4x192xf32>
    %cst_35 = arith.constant dense<0.000000e+00> : vector<4x192xf32>
    %216 = tpu.matmul %212, %28, %cst_35 {dimension_numbers = #tpu.dot_dimension_numbers<[1], [0], [0], [1], [0, 0, 1, 1], [], []>} : vector<4x64xf32>, vector<64x192xf32>, vector<4x192xf32> -> vector<4x192xf32>
    %217 = vector.extract_strided_slice %215 {offsets = [0, 0], sizes = [4, 128], strides = [1, 1]} : vector<4x192xf32> to vector<4x128xf32>
    %218 = vector.extract_strided_slice %216 {offsets = [0, 0], sizes = [4, 128], strides = [1, 1]} : vector<4x192xf32> to vector<4x128xf32>
    %219 = arith.addf %217, %218 : vector<4x128xf32>
    %220 = arith.negf %219 : vector<4x128xf32>
    %221 = math.exp %220 : vector<4x128xf32>
    %cst_36 = arith.constant 1.000000e+00 : f32
    %222 = vector.broadcast %cst_36 : f32 to vector<4x128xf32>
    %223 = arith.addf %222, %221 : vector<4x128xf32>
    %224 = arith.divf %222, %223 : vector<4x128xf32>
    %225 = vector.extract_strided_slice %224 {offsets = [0, 0], sizes = [4, 64], strides = [1, 1]} : vector<4x128xf32> to vector<4x64xf32>
    %226 = vector.extract_strided_slice %224 {offsets = [0, 64], sizes = [4, 64], strides = [1, 1]} : vector<4x128xf32> to vector<4x64xf32>
    %227 = vector.extract_strided_slice %215 {offsets = [0, 128], sizes = [4, 64], strides = [1, 1]} : vector<4x192xf32> to vector<4x64xf32>
    %228 = vector.extract_strided_slice %216 {offsets = [0, 128], sizes = [4, 64], strides = [1, 1]} : vector<4x192xf32> to vector<4x64xf32>
    %229 = vector.broadcast %29 : vector<1x64xf32> to vector<4x64xf32>
    %230 = arith.addf %228, %229 : vector<4x64xf32>
    %231 = arith.mulf %225, %230 : vector<4x64xf32>
    %232 = arith.addf %227, %231 : vector<4x64xf32>
    %233 = math.tanh %232 : vector<4x64xf32>
    %cst_37 = arith.constant 1.000000e+00 : f32
    %234 = vector.broadcast %cst_37 : f32 to vector<4x64xf32>
    %235 = arith.subf %234, %226 : vector<4x64xf32>
    %236 = arith.mulf %235, %233 : vector<4x64xf32>
    %237 = arith.mulf %226, %212 : vector<4x64xf32>
    %238 = arith.addf %236, %237 : vector<4x64xf32>
    %239 = vector.extract_strided_slice %238 {offsets = [0, 0], sizes = [4, 32], strides = [1, 1]} : vector<4x64xf32> to vector<4x32xf32>
    %c0_38 = arith.constant 0 : index
    %c0_39 = arith.constant 0 : index
    %c0_40 = arith.constant 0 : index
    %240 = vector.load %arg9[%c0_38, %c0_39, %c0_40] : memref<2x4x32xf32, #tpu.memory_space<vmem>>, vector<1x4x32xf32>
    %241 = vector.shape_cast %240 : vector<1x4x32xf32> to vector<4x32xf32>
    %242 = vector.shape_cast %239 : vector<4x32xf32> to vector<1x4x32xf32>
    tpu.vector_store %arg9[%c0_38, %c0_39, %c0_40], %242 {strides = array<i32>} : memref<2x4x32xf32, #tpu.memory_space<vmem>>, vector<1x4x32xf32>,
    %243 = vector.extract_strided_slice %238 {offsets = [0, 32], sizes = [4, 32], strides = [1, 1]} : vector<4x64xf32> to vector<4x32xf32>
    %c1 = arith.constant 1 : index
    %c0_41 = arith.constant 0 : index
    %c0_42 = arith.constant 0 : index
    %244 = vector.load %arg9[%c1, %c0_41, %c0_42] : memref<2x4x32xf32, #tpu.memory_space<vmem>>, vector<1x4x32xf32>
    %245 = vector.shape_cast %244 : vector<1x4x32xf32> to vector<4x32xf32>
    %246 = vector.shape_cast %243 : vector<4x32xf32> to vector<1x4x32xf32>
    tpu.vector_store %arg9[%c1, %c0_41, %c0_42], %246 {strides = array<i32>} : memref<2x4x32xf32, #tpu.memory_space<vmem>>, vector<1x4x32xf32>,
    %247 = arith.select %27, %56, %238 : vector<4x64xi1>, vector<4x64xf32>
    %248 = arith.select %27, %82, %212 : vector<4x64xi1>, vector<4x64xf32>
    %249 = arith.select %27, %108, %186 : vector<4x64xi1>, vector<4x64xf32>
    %250 = arith.select %27, %134, %160 : vector<4x64xi1>, vector<4x64xf32>
    %251 = arith.select %27, %160, %134 : vector<4x64xi1>, vector<4x64xf32>
    %252 = arith.select %27, %186, %108 : vector<4x64xi1>, vector<4x64xf32>
    %253 = arith.select %27, %212, %82 : vector<4x64xi1>, vector<4x64xf32>
    %254 = arith.select %27, %238, %56 : vector<4x64xi1>, vector<4x64xf32>
    %255 = tpu.concatenate %247, %248, %249, %250, %251, %252, %253, %254 in 0 : vector<4x64xf32>, vector<4x64xf32>, vector<4x64xf32>, vector<4x64xf32>, vector<4x64xf32>, vector<4x64xf32>, vector<4x64xf32>, vector<4x64xf32> -> vector<32x64xf32>
    %c0_43 = arith.constant 0 : index
    %c0_44 = arith.constant 0 : index
    %256 = vector.load %arg5[%c0_43, %c0_44] : memref<64x64xf32, #tpu.memory_space<vmem>>, vector<64x64xf32>
    %cst_45 = arith.constant dense<0.000000e+00> : vector<32x64xf32>
    %257 = tpu.matmul %255, %256, %cst_45 {dimension_numbers = #tpu.dot_dimension_numbers<[1], [0], [0], [1], [0, 0, 1, 1], [], []>} : vector<32x64xf32>, vector<64x64xf32>, vector<32x64xf32> -> vector<32x64xf32>
    %c0_46 = arith.constant 0 : index
    %c0_47 = arith.constant 0 : index
    %258 = vector.load %arg6[%c0_46, %c0_47] : memref<1x64xf32, #tpu.memory_space<vmem>>, vector<1x64xf32>
    %259 = vector.broadcast %258 : vector<1x64xf32> to vector<32x64xf32>
    %260 = arith.addf %257, %259 : vector<32x64xf32>
    %261 = math.tanh %260 : vector<32x64xf32>
    %c0_48 = arith.constant 0 : index
    %c0_49 = arith.constant 0 : index
    %262 = vector.load %arg7[%c0_48, %c0_49] : memref<64x64xf32, #tpu.memory_space<vmem>>, vector<64x64xf32>
    %cst_50 = arith.constant dense<0.000000e+00> : vector<32x64xf32>
    %263 = tpu.matmul %261, %262, %cst_50 {dimension_numbers = #tpu.dot_dimension_numbers<[1], [0], [0], [1], [0, 0, 1, 1], [], []>} : vector<32x64xf32>, vector<64x64xf32>, vector<32x64xf32> -> vector<32x64xf32>
    %264 = vector.shape_cast %263 : vector<32x64xf32> to vector<8x4x64xf32>
    %265 = vector.shape_cast %255 : vector<32x64xf32> to vector<8x4x64xf32>
    %cst_51 = arith.constant dense<0xFF800000> : vector<4x64xf32>
    %266 = vector.multi_reduction <maximumf>, %264, %cst_51 [0] : vector<8x4x64xf32> to vector<4x64xf32>
    %267 = vector.shape_cast %266 : vector<4x64xf32> to vector<1x4x64xf32>
    %268 = vector.broadcast %267 : vector<1x4x64xf32> to vector<8x4x64xf32>
    %269 = arith.subf %264, %268 : vector<8x4x64xf32>
    %270 = math.exp %269 : vector<8x4x64xf32>
    %cst_52 = arith.constant dense<0.000000e+00> : vector<4x64xf32>
    %271 = vector.multi_reduction <add>, %270, %cst_52 [0] : vector<8x4x64xf32> to vector<4x64xf32>
    %272 = vector.shape_cast %271 : vector<4x64xf32> to vector<1x4x64xf32>
    %273 = vector.broadcast %272 : vector<1x4x64xf32> to vector<8x4x64xf32>
    %274 = arith.divf %270, %273 : vector<8x4x64xf32>
    %c0_53 = arith.constant 0 : index
    %c0_54 = arith.constant 0 : index
    %c0_55 = arith.constant 0 : index
    %275 = vector.load %arg10[%c0_53, %c0_54, %c0_55] : memref<8x4x64xf32, #tpu.memory_space<vmem>>, vector<8x4x64xf32>
    tpu.vector_store %arg10[%c0_53, %c0_54, %c0_55], %274 {strides = array<i32>} : memref<8x4x64xf32, #tpu.memory_space<vmem>>, vector<8x4x64xf32>,
    %276 = arith.mulf %274, %265 : vector<8x4x64xf32>
    %cst_56 = arith.constant dense<0.000000e+00> : vector<4x64xf32>
    %277 = vector.multi_reduction <add>, %276, %cst_56 [0] : vector<8x4x64xf32> to vector<4x64xf32>
    %c0_57 = arith.constant 0 : index
    %c0_58 = arith.constant 0 : index
    %278 = vector.load %arg8[%c0_57, %c0_58] : memref<4x64xf32, #tpu.memory_space<vmem>>, vector<4x64xf32>
    tpu.vector_store %arg8[%c0_57, %c0_58], %277 {strides = array<i32>} : memref<4x64xf32, #tpu.memory_space<vmem>>, vector<4x64xf32>,
    return
  }
}

</mosaic_0001>

<llo_original>
// kernel: tpu_custom_call.1
$region0: #{tpu_custom_call.1}
  #allocation0 [shape = 'u32[]', space=smem, size = 0x4, offset = 0x4, fixed_abs, tag = 'smem constant byte address 0x4 - core index']
  #allocation1 [shape = 'u32[144,128]{1,0:T(1,128)}', space=vmem, size = 0x12000, scoped, tag = 'internal scratch']
  %s0 = inlined_call_operand.hbm [shape: f32[32,32], index: 0, kind: input, shape index: {}]
  %s1 = inlined_call_operand.hbm [shape: f32[32,192], index: 1, kind: input, shape index: {}]
  %s2 = inlined_call_operand.hbm [shape: f32[64,192], index: 2, kind: input, shape index: {}]
  %s3 = inlined_call_operand.vmem [shape: f32[1,192], index: 3, kind: input, shape index: {}]
  %s4 = inlined_call_operand.vmem [shape: f32[1,64], index: 4, kind: input, shape index: {}]
  %s5 = inlined_call_operand.hbm [shape: f32[64,64], index: 5, kind: input, shape index: {}]
  %s6 = inlined_call_operand.vmem [shape: f32[1,64], index: 6, kind: input, shape index: {}]
  %s7 = inlined_call_operand.hbm [shape: f32[64,64], index: 7, kind: input, shape index: {}]
  %s8 = inlined_call_operand.hbm [shape: f32[4,64], index: 8, kind: output, shape index: {0}]
  %s9 = inlined_call_operand.hbm [shape: f32[2,4,32], index: 9, kind: output, shape index: {1}]
  %s10 = inlined_call_operand.hbm [shape: f32[8,4,64], index: 10, kind: output, shape index: {2}]
  %11 = xla_tuple %s8, %s9, %s10
  %s12 = sld [smem:[#allocation0]]
  $region78: #{tpu_custom_call.1} parent=0
    _
  %s14 = ssub.s32 1, %s12
  %s15 = scalar_select 0, %s14, %s12
  $region1: #{tpu_custom_call.1} parent=0
    #allocation2 [shape = 'u8[16384]{0}', space=vmem, size = 0x4000, scoped, tag = 'input window, operand 0, single buffered']
    #allocation3 [shape = 's32[1]{0}', space=sflag, size = 0x4, scoped, tag = 'scoped memory for tpu_custom_call.1']
    #allocation4 [shape = 's32[1]{0}', space=sflag, size = 0x4, scoped, tag = 'scoped memory for tpu_custom_call.1']
    #allocation5 [shape = 'u8[32768]{0}', space=vmem, size = 0x8000, scoped, tag = 'input window, operand 1, single buffered']
    #allocation6 [shape = 's32[1]{0}', space=sflag, size = 0x4, scoped, tag = 'scoped memory for tpu_custom_call.1']
    #allocation7 [shape = 'u8[65536]{0}', space=vmem, size = 0x10000, scoped, tag = 'input window, operand 2, single buffered']
    #allocation8 [shape = 'u8[32768]{0}', space=vmem, size = 0x8000, scoped, tag = 'input window, operand 5, single buffered']
    #allocation9 [shape = 's32[1]{0}', space=sflag, size = 0x4, scoped, tag = 'scoped memory for tpu_custom_call.1']
    #allocation10 [shape = 'u8[32768]{0}', space=vmem, size = 0x8000, scoped, tag = 'input window, operand 7, single buffered']
    #allocation11 [shape = 'u8[2048]{0}', space=vmem, size = 0x800, scoped, tag = 'output window, operand 0, single buffered']
    #allocation12 [shape = 'u8[4096]{0}', space=vmem, size = 0x1000, scoped, tag = 'output window, operand 1, single buffered']
    #allocation13 [shape = 's32[1]{0}', space=sflag, size = 0x4, scoped, tag = 'scoped memory for tpu_custom_call.1']
    #allocation14 [shape = 'u8[16384]{0}', space=vmem, size = 0x4000, scoped, tag = 'output window, operand 2, single buffered']
    %16 = vsyncpa [#allocation3], 0
    %17 = vsyncpa [#allocation6], 0
    %18 = vsyncpa [#allocation9], 0
    %19 = vsyncpa [#allocation4], 0
    %20 = vsyncpa [#allocation13], 0
    // Predicated region
    $region2: #{tpu_custom_call.1} parent=1 // pred_check
      _
    $region3: #{tpu_custom_call.1} parent=1 // pred_check_branch
      %22 = sbr.rel (0) target = $region5
    $region4: #{tpu_custom_call.1} parent=1 // pred_region
      %s24 = ssub.s32 512, 512
      %25 = vsyncadd [#allocation3], %s24
      %s26 = sshll.u32 [#allocation2], 4
      %s27 = int_to_ptr.vmem [resolvable:$true] %s26
      %32 = dma.hbm_to_vmem [thread:$0]  %s0, 512, %s27, [#allocation3], 128, 128, 8
    $region5: #{tpu_custom_call.1} parent=1 // pred_fallthru
      _
    // Predicated region
    $region6: #{tpu_custom_call.1} parent=1 // pred_check
      _
    $region7: #{tpu_custom_call.1} parent=1 // pred_check_branch
      %34 = sbr.rel (0) target = $region9
    $region8: #{tpu_custom_call.1} parent=1 // pred_region
      %s36 = ssub.s32 1024, 1024
      %37 = vsyncadd [#allocation6], %s36
      %s38 = sshll.u32 [#allocation5], 4
      %s39 = int_to_ptr.vmem [resolvable:$true] %s38
      %44 = dma.hbm_to_vmem [thread:$0]  %s1, 1024, %s39, [#allocation6], 256, 256, 16
    $region9: #{tpu_custom_call.1} parent=1 // pred_fallthru
      _
    // Predicated region
    $region10: #{tpu_custom_call.1} parent=1 // pred_check
      _
    $region11: #{tpu_custom_call.1} parent=1 // pred_check_branch
      %46 = sbr.rel (0) target = $region13
    $region12: #{tpu_custom_call.1} parent=1 // pred_region
      %s48 = ssub.s32 2048, 2048
      %49 = vsyncadd [#allocation6], %s48
      %s50 = sshll.u32 [#allocation7], 4
      %s51 = int_to_ptr.vmem [resolvable:$true] %s50
      %56 = dma.hbm_to_vmem [thread:$0]  %s2, 2048, %s51, [#allocation6], 256, 256, 16
    $region13: #{tpu_custom_call.1} parent=1 // pred_fallthru
      _
    // Predicated region
    $region14: #{tpu_custom_call.1} parent=1 // pred_check
      _
    $region15: #{tpu_custom_call.1} parent=1 // pred_check_branch
      %58 = sbr.rel (0) target = $region17
    $region16: #{tpu_custom_call.1} parent=1 // pred_region
      _
    $region17: #{tpu_custom_call.1} parent=1 // pred_fallthru
      _
    // Predicated region
    $region18: #{tpu_custom_call.1} parent=1 // pred_check
      _
    $region19: #{tpu_custom_call.1} parent=1 // pred_check_branch
      %60 = sbr.rel (0) target = $region21
    $region20: #{tpu_custom_call.1} parent=1 // pred_region
      _
    $region21: #{tpu_custom_call.1} parent=1 // pred_fallthru
      _
    // Predicated region
    $region22: #{tpu_custom_call.1} parent=1 // pred_check
      _
    $region23: #{tpu_custom_call.1} parent=1 // pred_check_branch
      %62 = sbr.rel (0) target = $region25
    $region24: #{tpu_custom_call.1} parent=1 // pred_region
      %s64 = ssub.s32 1024, 1024
      %65 = vsyncadd [#allocation9], %s64
      %s66 = sshll.u32 [#allocation8], 4
      %s67 = int_to_ptr.vmem [resolvable:$true] %s66
      %72 = dma.hbm_to_vmem [thread:$0]  %s5, 1024, %s67, [#allocation9], 128, 128, 8
    $region25: #{tpu_custom_call.1} parent=1 // pred_fallthru
      _
    // Predicated region
    $region26: #{tpu_custom_call.1} parent=1 // pred_check
      _
    $region27: #{tpu_custom_call.1} parent=1 // pred_check_branch
      %74 = sbr.rel (0) target = $region29
    $region28: #{tpu_custom_call.1} parent=1 // pred_region
      _
    $region29: #{tpu_custom_call.1} parent=1 // pred_fallthru
      _
    // Predicated region
    $region30: #{tpu_custom_call.1} parent=1 // pred_check
      _
    $region31: #{tpu_custom_call.1} parent=1 // pred_check_branch
      %76 = sbr.rel (0) target = $region33
    $region32: #{tpu_custom_call.1} parent=1 // pred_region
      %s78 = ssub.s32 1024, 1024
      %79 = vsyncadd [#allocation9], %s78
      %s80 = sshll.u32 [#allocation10], 4
      %s81 = int_to_ptr.vmem [resolvable:$true] %s80
      %86 = dma.hbm_to_vmem [thread:$0]  %s7, 1024, %s81, [#allocation9], 128, 128, 8
    $region33: #{tpu_custom_call.1} parent=1 // pred_fallthru
      _
    // Predicated region
    $region34: #{tpu_custom_call.1} parent=1 // pred_check
      _
    $region35: #{tpu_custom_call.1} parent=1 // pred_check_branch
      %88 = sbr.rel (0) target = $region37
    $region36: #{tpu_custom_call.1} parent=1 // pred_region
      %89 = dma.done [#allocation3], 512
    $region37: #{tpu_custom_call.1} parent=1 // pred_fallthru
      _
    // Predicated region
    $region38: #{tpu_custom_call.1} parent=1 // pred_check
      _
    $region39: #{tpu_custom_call.1} parent=1 // pred_check_branch
      %91 = sbr.rel (0) target = $region41
    $region40: #{tpu_custom_call.1} parent=1 // pred_region
      %92 = dma.done [#allocation6], 1024
    $region41: #{tpu_custom_call.1} parent=1 // pred_fallthru
      _
    // Predicated region
    $region42: #{tpu_custom_call.1} parent=1 // pred_check
      _
    $region43: #{tpu_custom_call.1} parent=1 // pred_check_branch
      %94 = sbr.rel (0) target = $region45
    $region44: #{tpu_custom_call.1} parent=1 // pred_region
      %95 = dma.done [#allocation6], 2048
    $region45: #{tpu_custom_call.1} parent=1 // pred_fallthru
      _
    // Predicated region
    $region46: #{tpu_custom_call.1} parent=1 // pred_check
      _
    $region47: #{tpu_custom_call.1} parent=1 // pred_check_branch
      %97 = sbr.rel (0) target = $region49
    $region48: #{tpu_custom_call.1} parent=1 // pred_region
      %98 = dma.done [#allocation9], 1024
    $region49: #{tpu_custom_call.1} parent=1 // pred_fallthru
      _
    // Predicated region
    $region50: #{tpu_custom_call.1} parent=1 // pred_check
      _
    $region51: #{tpu_custom_call.1} parent=1 // pred_check_branch
      %100 = sbr.rel (0) target = $region53
    $region52: #{tpu_custom_call.1} parent=1 // pred_region
      %101 = dma.done [#allocation9], 1024
    $region53: #{tpu_custom_call.1} parent=1 // pred_fallthru
      _
    %v102 = vld [vmem:[#allocation2] sm:$0xff]
    %v103 = vld [vmem:[#allocation2 + $0x8] sm:$0xff]
    %v104 = vld [vmem:[#allocation2 + $0x10] sm:$0xff]
    %v105 = vld [vmem:[#allocation2 + $0x18] sm:$0xff]
    %v106 = vld [vmem:[#allocation5] sm:$0xff]
    %v107 = vld [vmem:[#allocation5 + $0x8] sm:$0xff]
    %v108 = vld [vmem:[#allocation5 + $0x10] sm:$0xff]
    %v109 = vld [vmem:[#allocation5 + $0x18] sm:$0xff]
    %v110 = vld [vmem:[#allocation5 + $0x20] sm:$0xff]
    %v111 = vld [vmem:[#allocation5 + $0x28] sm:$0xff]
    %v112 = vld [vmem:[#allocation5 + $0x30] sm:$0xff]
    %v113 = vld [vmem:[#allocation5 + $0x38] sm:$0xff]
    %v114 = vld [vmem:[%s3] sm:$0x3]
    %v116 = vlaneseq
    %v117 = vshrl.u32 %v116, 7
    %v118 = vsub.s32 0, %v117
    %v119 = vrot.slane %v114, %v118
    %v120 = vlaneseq
    %v121 = vshrl.u32 %v120, 7
    %v122 = vsub.s32 1, %v121
    %v123 = vrot.slane %v114, %v122
    %vm126 = vcmask 261120
    %v128 = vsel %vm126, %v102, 0
    %v131 = vsel %vm126, %v103, 0
    %v134 = vsel %vm126, %v104, 0
    %v137 = vsel %vm126, %v105, 0
    %139 = vmatprep.subr.mxu0 %v107
    %140 = vmatpush1.msra.mxu0 %v106
    %141 = vmatprep.subr.mxu0 %v109
    %142 = vmatpush1.msra.mxu0 %v108
    %143 = vmatprep.subr.mxu0 %v111
    %144 = vmatpush1.msra.mxu0 %v110
    %145 = vmatprep.subr.mxu0 %v113
    %146 = vmatpush1.msra.mxu0 %v112
    %147 = vmatprep.subr.mxu0 0.0
    %148 = vmatpush1.msra.mxu0 0.0
    %149 = vmatprep.subr.mxu0 0.0
    %150 = vmatpush1.msra.mxu0 0.0
    %151 = vmatprep.subr.mxu0 0.0
    %152 = vmatpush1.msra.mxu0 0.0
    %153 = vmatprep.subr.mxu0 0.0
    %154 = vmatpush1.msra.mxu0 0.0
    %155 = vmatprep.subr.mxu0 0.0
    %156 = vmatpush1.msra.mxu0 0.0
    %157 = vmatprep.subr.mxu0 0.0
    %158 = vmatpush1.msra.mxu0 0.0
    %159 = vmatprep.subr.mxu0 0.0
    %160 = vmatpush1.msra.mxu0 0.0
    %161 = vmatprep.subr.mxu0 0.0
    %162 = vmatpush1.msra.mxu0 0.0
    %163 = vmatprep.subr.mxu0 0.0
    %164 = vmatpush1.msra.mxu0 0.0
    %165 = vmatprep.subr.mxu0 0.0
    %166 = vmatpush1.msra.mxu0 0.0
    %167 = vmatprep.subr.mxu0 0.0
    %168 = vmatpush1.msra.mxu0 0.0
    %169 = vmatprep.subr.mxu0 0.0
    %170 = vmatpush1.msra.mxu0 0.0
    %171 = vmatprep.subr.mxu0 0.0
    %172 = vmatpush1.msra.mxu0 0.0
    %173 = vmatprep.subr.mxu0 0.0
    %174 = vmatpush1.msra.mxu0 0.0
    %175 = vmatprep.subr.mxu0 0.0
    %176 = vmatpush1.msra.mxu0 0.0
    %177 = vmatprep.subr.mxu0 0.0
    %178 = vmatpush1.msra.mxu0 0.0
    %179 = vmatprep.subr.mxu0 0.0
    %180 = vmatpush1.msra.mxu0 0.0
    %181 = vmatprep.subr.mxu0 0.0
    %182 = vmatpush1.msra.mxu0 0.0
    %183 = vmatprep.subr.mxu0 0.0
    %184 = vmatpush1.msra.mxu0 0.0
    %185 = vmatprep.subr.mxu0 0.0
    %186 = vmatpush1.msra.mxu0 0.0
    %187 = vmatprep.subr.mxu0 0.0
    %188 = vmatpush1.msra.mxu0 0.0
    %189 = vmatprep.subr.mxu0 0.0
    %190 = vmatpush1.msra.mxu0 0.0
    %191 = vmatprep.subr.mxu0 0.0
    %192 = vmatpush1.msra.mxu0 0.0
    %193 = vmatprep.subr.mxu0 0.0
    %194 = vmatpush1.msra.mxu0 0.0
    %195 = vmatprep.subr.mxu0 0.0
    %196 = vmatpush1.msra.mxu0 0.0
    %197 = vmatprep.subr.mxu0 0.0
    %198 = vmatpush1.msra.mxu0 0.0
    %199 = vmatprep.subr.mxu0 0.0
    %200 = vmatpush1.msra.mxu0 0.0
    %201 = vmatprep.subr.mxu0 0.0
    %202 = vmatpush1.msra.mxu0 0.0
    %203 = vmatprep.mubr.f32.mxu0 0.0
    %204 = vmatmul.mubr.f32.gmra.mrb[0].mxu0 %v128
    %v205 = vpop.f32.mrb[0].mxu0
    %v206 = vadd.f32 %v119, %v205
    %v207 = vpop.f32.mrb[0].mxu0
    %v208 = vadd.f32 %v123, %v207
    %209 = vmatprep.mubr.f32.mxu0 0.0
    %210 = vmatmul.mubr.f32.gmra.mrb[0].mxu0 %v131
    %v211 = vpop.f32.mrb[0].mxu0
    %v212 = vadd.f32 %v119, %v211
    %v213 = vpop.f32.mrb[0].mxu0
    %v214 = vadd.f32 %v123, %v213
    %215 = vmatprep.mubr.f32.mxu0 0.0
    %216 = vmatmul.mubr.f32.gmra.mrb[0].mxu0 %v134
    %v217 = vpop.f32.mrb[0].mxu0
    %v218 = vadd.f32 %v119, %v217
    %v219 = vpop.f32.mrb[0].mxu0
    %v220 = vadd.f32 %v123, %v219
    %221 = vmatprep.mubr.f32.mxu0 0.0
    %222 = vmatmul.mubr.f32.gmra.mrb[0].mxu0 %v137
    %v223 = vpop.f32.mrb[0].mxu0
    %v224 = vadd.f32 %v119, %v223
    %v225 = vpop.f32.mrb[0].mxu0
    %v226 = vadd.f32 %v123, %v225
    %227 = vdwg.mxu0
    %v228 = vlaneseq
    %v229 = vand.u32 %v228, 127
    %v230 = vadd.s32 %v229, 128
    %vm231 = vcmp.lt.s32.totalorder %v229, 0
    %v232 = vsub.s32 0, %v229
    %v233 = vsel %vm231, %v232, %v229
    %v234 = vshrl.u32 %v233, 6
    %v235 = vand.u32 %v233, 63
    %v236 = vsub.s32 0, %v235
    %v237 = vsel %vm231, %v236, %v235
    %vm238 = vcmp.lt.s32.totalorder %v230, 0
    %v239 = vsub.s32 0, %v230
    %v240 = vsel %vm238, %v239, %v230
    %v241 = vshrl.u32 %v240, 6
    %v242 = vand.u32 %v240, 63
    %v243 = vsub.s32 0, %v242
    %v244 = vsel %vm238, %v243, %v242
    %vm245 = vcmp.ne.s32.totalorder %v237, 0
    %vm246 = vcmp.ne.s32.totalorder %v244, 0
    %vm247 = vcmp.lt.s32.totalorder %v237, 0
    %vm248 = vcmp.lt.s32.totalorder %v244, 0
    %vm249 = vmand %vm247, %vm245
    %vm250 = vmand %vm248, %vm246
    %v251 = vadd.s32 %v237, 64
    %v252 = vadd.s32 %v244, 64
    %v253 = vsel %vm249, %v251, %v237
    %v254 = vsel %vm250, %v252, %v244
    %vm255 = vcmp.lt.s32.totalorder %v253, 32
    %vm256 = vcmp.lt.s32.totalorder %v254, 32
    %vm257 = vcmp.lt.s32.totalorder %v229, 32
    %v258 = vld [vmem:[#allocation7] sm:$0xff]
    %v259 = vld [vmem:[#allocation7 + $0x8] sm:$0xff]
    %v260 = vld [vmem:[#allocation7 + $0x10] sm:$0xff]
    %v261 = vld [vmem:[#allocation7 + $0x18] sm:$0xff]
    %v262 = vld [vmem:[#allocation7 + $0x20] sm:$0xff]
    %v263 = vld [vmem:[#allocation7 + $0x28] sm:$0xff]
    %v264 = vld [vmem:[#allocation7 + $0x30] sm:$0xff]
    %v265 = vld [vmem:[#allocation7 + $0x38] sm:$0xff]
    %v266 = vld [vmem:[#allocation7 + $0x40] sm:$0xff]
    %v267 = vld [vmem:[#allocation7 + $0x48] sm:$0xff]
    %v268 = vld [vmem:[#allocation7 + $0x50] sm:$0xff]
    %v269 = vld [vmem:[#allocation7 + $0x58] sm:$0xff]
    %v270 = vld [vmem:[#allocation7 + $0x60] sm:$0xff]
    %v271 = vld [vmem:[#allocation7 + $0x68] sm:$0xff]
    %v272 = vld [vmem:[#allocation7 + $0x70] sm:$0xff]
    %v273 = vld [vmem:[#allocation7 + $0x78] sm:$0xff]
    %v274 = vld [vmem:[%s4] sm:$0x1]
    %v277 = vrot.slane %v224, 4
    %v278 = vrot.slane %v226, 4
    %v281 = vsel %vm255, %v206, %v277
    %v282 = vsel %vm256, %v208, %v278
    %vm283 = vcmask 523264
    %v285 = vsel %vm283, 0.0, 0
    %287 = vmatprep.subr.mxu0 %v259
    %288 = vmatpush1.msra.mxu0 %v258
    %289 = vmatprep.subr.mxu0 %v261
    %290 = vmatpush1.msra.mxu0 %v260
    %291 = vmatprep.subr.mxu0 %v263
    %292 = vmatpush1.msra.mxu0 %v262
    %293 = vmatprep.subr.mxu0 %v265
    %294 = vmatpush1.msra.mxu0 %v264
    %295 = vmatprep.subr.mxu0 %v267
    %296 = vmatpush1.msra.mxu0 %v266
    %297 = vmatprep.subr.mxu0 %v269
    %298 = vmatpush1.msra.mxu0 %v268
    %299 = vmatprep.subr.mxu0 %v271
    %300 = vmatpush1.msra.mxu0 %v270
    %301 = vmatprep.subr.mxu0 %v273
    %302 = vmatpush1.msra.mxu0 %v272
    %303 = vmatprep.subr.mxu0 0.0
    %304 = vmatpush1.msra.mxu0 0.0
    %305 = vmatprep.subr.mxu0 0.0
    %306 = vmatpush1.msra.mxu0 0.0
    %307 = vmatprep.subr.mxu0 0.0
    %308 = vmatpush1.msra.mxu0 0.0
    %309 = vmatprep.subr.mxu0 0.0
    %310 = vmatpush1.msra.mxu0 0.0
    %311 = vmatprep.subr.mxu0 0.0
    %312 = vmatpush1.msra.mxu0 0.0
    %313 = vmatprep.subr.mxu0 0.0
    %314 = vmatpush1.msra.mxu0 0.0
    %315 = vmatprep.subr.mxu0 0.0
    %316 = vmatpush1.msra.mxu0 0.0
    %317 = vmatprep.subr.mxu0 0.0
    %318 = vmatpush1.msra.mxu0 0.0
    %319 = vmatprep.subr.mxu0 0.0
    %320 = vmatpush1.msra.mxu0 0.0
    %321 = vmatprep.subr.mxu0 0.0
    %322 = vmatpush1.msra.mxu0 0.0
    %323 = vmatprep.subr.mxu0 0.0
    %324 = vmatpush1.msra.mxu0 0.0
    %325 = vmatprep.subr.mxu0 0.0
    %326 = vmatpush1.msra.mxu0 0.0
    %327 = vmatprep.subr.mxu0 0.0
    %328 = vmatpush1.msra.mxu0 0.0
    %329 = vmatprep.subr.mxu0 0.0
    %330 = vmatpush1.msra.mxu0 0.0
    %331 = vmatprep.subr.mxu0 0.0
    %332 = vmatpush1.msra.mxu0 0.0
    %333 = vmatprep.subr.mxu0 0.0
    %334 = vmatpush1.msra.mxu0 0.0
    %335 = vmatprep.subr.mxu0 0.0
    %336 = vmatpush1.msra.mxu0 0.0
    %337 = vmatprep.subr.mxu0 0.0
    %338 = vmatpush1.msra.mxu0 0.0
    %339 = vmatprep.subr.mxu0 0.0
    %340 = vmatpush1.msra.mxu0 0.0
    %341 = vmatprep.subr.mxu0 0.0
    %342 = vmatpush1.msra.mxu0 0.0
    %343 = vmatprep.subr.mxu0 0.0
    %344 = vmatpush1.msra.mxu0 0.0
    %345 = vmatprep.subr.mxu0 0.0
    %346 = vmatpush1.msra.mxu0 0.0
    %347 = vmatprep.subr.mxu0 0.0
    %348 = vmatpush1.msra.mxu0 0.0
    %349 = vmatprep.subr.mxu0 0.0
    %350 = vmatpush1.msra.mxu0 0.0
    %351 = vmatprep.mubr.f32.mxu0 0.0
    %352 = vmatmul.mubr.f32.gmra.mrb[0].mxu0 %v285
    %v353 = vpop.f32.mrb[0].mxu0
    %v354 = vadd.f32 0.0, %v353
    %v355 = vpop.f32.mrb[0].mxu0
    %v356 = vadd.f32 0.0, %v355
    %357 = vdwg.mxu0
    %v358 = vadd.f32 %v281, %v354
    %v359 = vxor.u32 %v358, 2147483648
    %v360 = vmul.f32 %v359, 1.442695
    %v361 = vpow.pop %v360
    %v362 = vadd.f32 %v361, 1.0
    %v363 = vrcp.pop %v362
    %v364 = vmul.f32 1.0, %v363
    %v366 = vlaneseq
    %v367 = vshrl.u32 %v366, 7
    %v368 = vsub.s32 0, %v367
    %v369 = vrot.slane %v274, %v368
    %v371 = vadd.f32 %v356, %v369
    %v372 = vmul.f32 %v364, %v371
    %v373 = vadd.f32 %v282, %v372
    %v374 = vtanh.pop %v373
    %v375 = vsub.f32 1.0, %v364
    %377 = vrot.lane.b32.xlu0 %v374, 64
    %v378 = vpop.permute.xlu0 %377
    %v380 = vmul.f32 %v375, %v378
    %v381 = vmul.f32 %v364, 0.0
    %v382 = vadd.f32 %v380, %v381
    %384 = vrot.lane.b32.xlu0 %v382, 64
    %v385 = vpop.permute.xlu0 %384
    %v386 = vsel %vm283, %v385, 0
    %388 = vmatprep.subr.mxu0 %v259
    %389 = vmatpush1.msra.mxu0 %v258
    %390 = vmatprep.subr.mxu0 %v261
    %391 = vmatpush1.msra.mxu0 %v260
    %392 = vmatprep.subr.mxu0 %v263
    %393 = vmatpush1.msra.mxu0 %v262
    %394 = vmatprep.subr.mxu0 %v265
    %395 = vmatpush1.msra.mxu0 %v264
    %396 = vmatprep.subr.mxu0 %v267
    %397 = vmatpush1.msra.mxu0 %v266
    %398 = vmatprep.subr.mxu0 %v269
    %399 = vmatpush1.msra.mxu0 %v268
    %400 = vmatprep.subr.mxu0 %v271
    %401 = vmatpush1.msra.mxu0 %v270
    %402 = vmatprep.subr.mxu0 %v273
    %403 = vmatpush1.msra.mxu0 %v272
    %404 = vmatprep.subr.mxu0 0.0
    %405 = vmatpush1.msra.mxu0 0.0
    %406 = vmatprep.subr.mxu0 0.0
    %407 = vmatpush1.msra.mxu0 0.0
    %408 = vmatprep.subr.mxu0 0.0
    %409 = vmatpush1.msra.mxu0 0.0
    %410 = vmatprep.subr.mxu0 0.0
    %411 = vmatpush1.msra.mxu0 0.0
    %412 = vmatprep.subr.mxu0 0.0
    %413 = vmatpush1.msra.mxu0 0.0
    %414 = vmatprep.subr.mxu0 0.0
    %415 = vmatpush1.msra.mxu0 0.0
    %416 = vmatprep.subr.mxu0 0.0
    %417 = vmatpush1.msra.mxu0 0.0
    %418 = vmatprep.subr.mxu0 0.0
    %419 = vmatpush1.msra.mxu0 0.0
    %420 = vmatprep.subr.mxu0 0.0
    %421 = vmatpush1.msra.mxu0 0.0
    %422 = vmatprep.subr.mxu0 0.0
    %423 = vmatpush1.msra.mxu0 0.0
    %424 = vmatprep.subr.mxu0 0.0
    %425 = vmatpush1.msra.mxu0 0.0
    %426 = vmatprep.subr.mxu0 0.0
    %427 = vmatpush1.msra.mxu0 0.0
    %428 = vmatprep.subr.mxu0 0.0
    %429 = vmatpush1.msra.mxu0 0.0
    %430 = vmatprep.subr.mxu0 0.0
    %431 = vmatpush1.msra.mxu0 0.0
    %432 = vmatprep.subr.mxu0 0.0
    %433 = vmatpush1.msra.mxu0 0.0
    %434 = vmatprep.subr.mxu0 0.0
    %435 = vmatpush1.msra.mxu0 0.0
    %436 = vmatprep.subr.mxu0 0.0
    %437 = vmatpush1.msra.mxu0 0.0
    %438 = vmatprep.subr.mxu0 0.0
    %439 = vmatpush1.msra.mxu0 0.0
    %440 = vmatprep.subr.mxu0 0.0
    %441 = vmatpush1.msra.mxu0 0.0
    %442 = vmatprep.subr.mxu0 0.0
    %443 = vmatpush1.msra.mxu0 0.0
    %444 = vmatprep.subr.mxu0 0.0
    %445 = vmatpush1.msra.mxu0 0.0
    %446 = vmatprep.subr.mxu0 0.0
    %447 = vmatpush1.msra.mxu0 0.0
    %448 = vmatprep.subr.mxu0 0.0
    %449 = vmatpush1.msra.mxu0 0.0
    %450 = vmatprep.subr.mxu0 0.0
    %451 = vmatpush1.msra.mxu0 0.0
    %452 = vmatprep.mubr.f32.mxu0 0.0
    %453 = vmatmul.mubr.f32.gmra.mrb[0].mxu0 %v386
    %v454 = vpop.f32.mrb[0].mxu0
    %v455 = vadd.f32 0.0, %v454
    %v456 = vpop.f32.mrb[0].mxu0
    %v457 = vadd.f32 0.0, %v456
    %458 = vdwg.mxu0
    %v460 = vrot.slane %v455, 4
    %v462 = vadd.f32 %v281, %v460
    %v463 = vxor.u32 %v462, 2147483648
    %v464 = vmul.f32 %v463, 1.442695
    %v465 = vpow.pop %v464
    %v466 = vadd.f32 %v465, 1.0
    %v467 = vrcp.pop %v466
    %v468 = vmul.f32 1.0, %v467
    %v469 = vadd.f32 %v457, %v369
    %v471 = vrot.slane %v469, 4
    %v473 = vmul.f32 %v468, %v471
    %v474 = vadd.f32 %v282, %v473
    %v475 = vtanh.pop %v474
    %v476 = vsub.f32 1.0, %v468
    %478 = vrot.lane.b32.xlu0 %v475, 64
    %v479 = vpop.permute.xlu0 %478
    %v481 = vmul.f32 %v476, %v479
    %v482 = vrot.slane %v382, 4
    %v484 = vmul.f32 %v468, %v482
    %v485 = vadd.f32 %v481, %v484
    %v488 = vrot.slane %v218, 4
    %v489 = vrot.slane %v220, 4
    %v492 = vsel %vm255, %v212, %v488
    %v493 = vsel %vm256, %v214, %v489
    %v495 = vrot.slane %v485, 4
    %496 = vrot.lane.b32.xlu0 %v495, 64
    %v497 = vpop.permute.xlu0 %496
    %v498 = vsel %vm283, %v497, 0
    %500 = vmatprep.subr.mxu0 %v259
    %501 = vmatpush1.msra.mxu0 %v258
    %502 = vmatprep.subr.mxu0 %v261
    %503 = vmatpush1.msra.mxu0 %v260
    %504 = vmatprep.subr.mxu0 %v263
    %505 = vmatpush1.msra.mxu0 %v262
    %506 = vmatprep.subr.mxu0 %v265
    %507 = vmatpush1.msra.mxu0 %v264
    %508 = vmatprep.subr.mxu0 %v267
    %509 = vmatpush1.msra.mxu0 %v266
    %510 = vmatprep.subr.mxu0 %v269
    %511 = vmatpush1.msra.mxu0 %v268
    %512 = vmatprep.subr.mxu0 %v271
    %513 = vmatpush1.msra.mxu0 %v270
    %514 = vmatprep.subr.mxu0 %v273
    %515 = vmatpush1.msra.mxu0 %v272
    %516 = vmatprep.subr.mxu0 0.0
    %517 = vmatpush1.msra.mxu0 0.0
    %518 = vmatprep.subr.mxu0 0.0
    %519 = vmatpush1.msra.mxu0 0.0
    %520 = vmatprep.subr.mxu0 0.0
    %521 = vmatpush1.msra.mxu0 0.0
    %522 = vmatprep.subr.mxu0 0.0
    %523 = vmatpush1.msra.mxu0 0.0
    %524 = vmatprep.subr.mxu0 0.0
    %525 = vmatpush1.msra.mxu0 0.0
    %526 = vmatprep.subr.mxu0 0.0
    %527 = vmatpush1.msra.mxu0 0.0
    %528 = vmatprep.subr.mxu0 0.0
    %529 = vmatpush1.msra.mxu0 0.0
    %530 = vmatprep.subr.mxu0 0.0
    %531 = vmatpush1.msra.mxu0 0.0
    %532 = vmatprep.subr.mxu0 0.0
    %533 = vmatpush1.msra.mxu0 0.0
    %534 = vmatprep.subr.mxu0 0.0
    %535 = vmatpush1.msra.mxu0 0.0
    %536 = vmatprep.subr.mxu0 0.0
    %537 = vmatpush1.msra.mxu0 0.0
    %538 = vmatprep.subr.mxu0 0.0
    %539 = vmatpush1.msra.mxu0 0.0
    %540 = vmatprep.subr.mxu0 0.0
    %541 = vmatpush1.msra.mxu0 0.0
    %542 = vmatprep.subr.mxu0 0.0
    %543 = vmatpush1.msra.mxu0 0.0
    %544 = vmatprep.subr.mxu0 0.0
    %545 = vmatpush1.msra.mxu0 0.0
    %546 = vmatprep.subr.mxu0 0.0
    %547 = vmatpush1.msra.mxu0 0.0
    %548 = vmatprep.subr.mxu0 0.0
    %549 = vmatpush1.msra.mxu0 0.0
    %550 = vmatprep.subr.mxu0 0.0
    %551 = vmatpush1.msra.mxu0 0.0
    %552 = vmatprep.subr.mxu0 0.0
    %553 = vmatpush1.msra.mxu0 0.0
    %554 = vmatprep.subr.mxu0 0.0
    %555 = vmatpush1.msra.mxu0 0.0
    %556 = vmatprep.subr.mxu0 0.0
    %557 = vmatpush1.msra.mxu0 0.0
    %558 = vmatprep.subr.mxu0 0.0
    %559 = vmatpush1.msra.mxu0 0.0
    %560 = vmatprep.subr.mxu0 0.0
    %561 = vmatpush1.msra.mxu0 0.0
    %562 = vmatprep.subr.mxu0 0.0
    %563 = vmatpush1.msra.mxu0 0.0
    %564 = vmatprep.mubr.f32.mxu0 0.0
    %565 = vmatmul.mubr.f32.gmra.mrb[0].mxu0 %v498
    %v566 = vpop.f32.mrb[0].mxu0
    %v567 = vadd.f32 0.0, %v566
    %v568 = vpop.f32.mrb[0].mxu0
    %v569 = vadd.f32 0.0, %v568
    %570 = vdwg.mxu0
    %v571 = vadd.f32 %v492, %v567
    %v572 = vxor.u32 %v571, 2147483648
    %v573 = vmul.f32 %v572, 1.442695
    %v574 = vpow.pop %v573
    %v575 = vadd.f32 %v574, 1.0
    %v576 = vrcp.pop %v575
    %v577 = vmul.f32 1.0, %v576
    %v578 = vadd.f32 %v569, %v369
    %v579 = vmul.f32 %v577, %v578
    %v580 = vadd.f32 %v493, %v579
    %v581 = vtanh.pop %v580
    %v582 = vsub.f32 1.0, %v577
    %584 = vrot.lane.b32.xlu0 %v581, 64
    %v585 = vpop.permute.xlu0 %584
    %v587 = vmul.f32 %v582, %v585
    %v589 = vmul.f32 %v577, %v495
    %v590 = vadd.f32 %v587, %v589
    %592 = vrot.lane.b32.xlu0 %v590, 64
    %v593 = vpop.permute.xlu0 %592
    %v594 = vsel %vm283, %v593, 0
    %596 = vmatprep.subr.mxu0 %v259
    %597 = vmatpush1.msra.mxu0 %v258
    %598 = vmatprep.subr.mxu0 %v261
    %599 = vmatpush1.msra.mxu0 %v260
    %600 = vmatprep.subr.mxu0 %v263
    %601 = vmatpush1.msra.mxu0 %v262
    %602 = vmatprep.subr.mxu0 %v265
    %603 = vmatpush1.msra.mxu0 %v264
    %604 = vmatprep.subr.mxu0 %v267
    %605 = vmatpush1.msra.mxu0 %v266
    %606 = vmatprep.subr.mxu0 %v269
    %607 = vmatpush1.msra.mxu0 %v268
    %608 = vmatprep.subr.mxu0 %v271
    %609 = vmatpush1.msra.mxu0 %v270
    %610 = vmatprep.subr.mxu0 %v273
    %611 = vmatpush1.msra.mxu0 %v272
    %612 = vmatprep.subr.mxu0 0.0
    %613 = vmatpush1.msra.mxu0 0.0
    %614 = vmatprep.subr.mxu0 0.0
    %615 = vmatpush1.msra.mxu0 0.0
    %616 = vmatprep.subr.mxu0 0.0
    %617 = vmatpush1.msra.mxu0 0.0
    %618 = vmatprep.subr.mxu0 0.0
    %619 = vmatpush1.msra.mxu0 0.0
    %620 = vmatprep.subr.mxu0 0.0
    %621 = vmatpush1.msra.mxu0 0.0
    %622 = vmatprep.subr.mxu0 0.0
    %623 = vmatpush1.msra.mxu0 0.0
    %624 = vmatprep.subr.mxu0 0.0
    %625 = vmatpush1.msra.mxu0 0.0
    %626 = vmatprep.subr.mxu0 0.0
    %627 = vmatpush1.msra.mxu0 0.0
    %628 = vmatprep.subr.mxu0 0.0
    %629 = vmatpush1.msra.mxu0 0.0
    %630 = vmatprep.subr.mxu0 0.0
    %631 = vmatpush1.msra.mxu0 0.0
    %632 = vmatprep.subr.mxu0 0.0
    %633 = vmatpush1.msra.mxu0 0.0
    %634 = vmatprep.subr.mxu0 0.0
    %635 = vmatpush1.msra.mxu0 0.0
    %636 = vmatprep.subr.mxu0 0.0
    %637 = vmatpush1.msra.mxu0 0.0
    %638 = vmatprep.subr.mxu0 0.0
    %639 = vmatpush1.msra.mxu0 0.0
    %640 = vmatprep.subr.mxu0 0.0
    %641 = vmatpush1.msra.mxu0 0.0
    %642 = vmatprep.subr.mxu0 0.0
    %643 = vmatpush1.msra.mxu0 0.0
    %644 = vmatprep.subr.mxu0 0.0
    %645 = vmatpush1.msra.mxu0 0.0
    %646 = vmatprep.subr.mxu0 0.0
    %647 = vmatpush1.msra.mxu0 0.0
    %648 = vmatprep.subr.mxu0 0.0
    %649 = vmatpush1.msra.mxu0 0.0
    %650 = vmatprep.subr.mxu0 0.0
    %651 = vmatpush1.msra.mxu0 0.0
    %652 = vmatprep.subr.mxu0 0.0
    %653 = vmatpush1.msra.mxu0 0.0
    %654 = vmatprep.subr.mxu0 0.0
    %655 = vmatpush1.msra.mxu0 0.0
    %656 = vmatprep.subr.mxu0 0.0
    %657 = vmatpush1.msra.mxu0 0.0
    %658 = vmatprep.subr.mxu0 0.0
    %659 = vmatpush1.msra.mxu0 0.0
    %660 = vmatprep.mubr.f32.mxu0 0.0
    %661 = vmatmul.mubr.f32.gmra.mrb[0].mxu0 %v594
    %v662 = vpop.f32.mrb[0].mxu0
    %v663 = vadd.f32 0.0, %v662
    %v664 = vpop.f32.mrb[0].mxu0
    %v665 = vadd.f32 0.0, %v664
    %666 = vdwg.mxu0
    %v668 = vrot.slane %v663, 4
    %v670 = vadd.f32 %v492, %v668
    %v671 = vxor.u32 %v670, 2147483648
    %v672 = vmul.f32 %v671, 1.442695
    %v673 = vpow.pop %v672
    %v674 = vadd.f32 %v673, 1.0
    %v675 = vrcp.pop %v674
    %v676 = vmul.f32 1.0, %v675
    %v677 = vadd.f32 %v665, %v369
    %v679 = vrot.slane %v677, 4
    %v681 = vmul.f32 %v676, %v679
    %v682 = vadd.f32 %v493, %v681
    %v683 = vtanh.pop %v682
    %v684 = vsub.f32 1.0, %v676
    %686 = vrot.lane.b32.xlu0 %v683, 64
    %v687 = vpop.permute.xlu0 %686
    %v689 = vmul.f32 %v684, %v687
    %v690 = vrot.slane %v590, 4
    %v692 = vmul.f32 %v676, %v690
    %v693 = vadd.f32 %v689, %v692
    %v696 = vrot.slane %v212, 4
    %v697 = vrot.slane %v214, 4
    %v700 = vsel %vm255, %v218, %v696
    %v701 = vsel %vm256, %v220, %v697
    %v703 = vrot.slane %v693, 4
    %704 = vrot.lane.b32.xlu0 %v703, 64
    %v705 = vpop.permute.xlu0 %704
    %v706 = vsel %vm283, %v705, 0
    %708 = vmatprep.subr.mxu0 %v259
    %709 = vmatpush1.msra.mxu0 %v258
    %710 = vmatprep.subr.mxu0 %v261
    %711 = vmatpush1.msra.mxu0 %v260
    %712 = vmatprep.subr.mxu0 %v263
    %713 = vmatpush1.msra.mxu0 %v262
    %714 = vmatprep.subr.mxu0 %v265
    %715 = vmatpush1.msra.mxu0 %v264
    %716 = vmatprep.subr.mxu0 %v267
    %717 = vmatpush1.msra.mxu0 %v266
    %718 = vmatprep.subr.mxu0 %v269
    %719 = vmatpush1.msra.mxu0 %v268
    %720 = vmatprep.subr.mxu0 %v271
    %721 = vmatpush1.msra.mxu0 %v270
    %722 = vmatprep.subr.mxu0 %v273
    %723 = vmatpush1.msra.mxu0 %v272
    %724 = vmatprep.subr.mxu0 0.0
    %725 = vmatpush1.msra.mxu0 0.0
    %726 = vmatprep.subr.mxu0 0.0
    %727 = vmatpush1.msra.mxu0 0.0
    %728 = vmatprep.subr.mxu0 0.0
    %729 = vmatpush1.msra.mxu0 0.0
    %730 = vmatprep.subr.mxu0 0.0
    %731 = vmatpush1.msra.mxu0 0.0
    %732 = vmatprep.subr.mxu0 0.0
    %733 = vmatpush1.msra.mxu0 0.0
    %734 = vmatprep.subr.mxu0 0.0
    %735 = vmatpush1.msra.mxu0 0.0
    %736 = vmatprep.subr.mxu0 0.0
    %737 = vmatpush1.msra.mxu0 0.0
    %738 = vmatprep.subr.mxu0 0.0
    %739 = vmatpush1.msra.mxu0 0.0
    %740 = vmatprep.subr.mxu0 0.0
    %741 = vmatpush1.msra.mxu0 0.0
    %742 = vmatprep.subr.mxu0 0.0
    %743 = vmatpush1.msra.mxu0 0.0
    %744 = vmatprep.subr.mxu0 0.0
    %745 = vmatpush1.msra.mxu0 0.0
    %746 = vmatprep.subr.mxu0 0.0
    %747 = vmatpush1.msra.mxu0 0.0
    %748 = vmatprep.subr.mxu0 0.0
    %749 = vmatpush1.msra.mxu0 0.0
    %750 = vmatprep.subr.mxu0 0.0
    %751 = vmatpush1.msra.mxu0 0.0
    %752 = vmatprep.subr.mxu0 0.0
    %753 = vmatpush1.msra.mxu0 0.0
    %754 = vmatprep.subr.mxu0 0.0
    %755 = vmatpush1.msra.mxu0 0.0
    %756 = vmatprep.subr.mxu0 0.0
    %757 = vmatpush1.msra.mxu0 0.0
    %758 = vmatprep.subr.mxu0 0.0
    %759 = vmatpush1.msra.mxu0 0.0
    %760 = vmatprep.subr.mxu0 0.0
    %761 = vmatpush1.msra.mxu0 0.0
    %762 = vmatprep.subr.mxu0 0.0
    %763 = vmatpush1.msra.mxu0 0.0
    %764 = vmatprep.subr.mxu0 0.0
    %765 = vmatpush1.msra.mxu0 0.0
    %766 = vmatprep.subr.mxu0 0.0
    %767 = vmatpush1.msra.mxu0 0.0
    %768 = vmatprep.subr.mxu0 0.0
    %769 = vmatpush1.msra.mxu0 0.0
    %770 = vmatprep.subr.mxu0 0.0
    %771 = vmatpush1.msra.mxu0 0.0
    %772 = vmatprep.mubr.f32.mxu0 0.0
    %773 = vmatmul.mubr.f32.gmra.mrb[0].mxu0 %v706
    %v774 = vpop.f32.mrb[0].mxu0
    %v775 = vadd.f32 0.0, %v774
    %v776 = vpop.f32.mrb[0].mxu0
    %v777 = vadd.f32 0.0, %v776
    %778 = vdwg.mxu0
    %v779 = vadd.f32 %v700, %v775
    %v780 = vxor.u32 %v779, 2147483648
    %v781 = vmul.f32 %v780, 1.442695
    %v782 = vpow.pop %v781
    %v783 = vadd.f32 %v782, 1.0
    %v784 = vrcp.pop %v783
    %v785 = vmul.f32 1.0, %v784
    %v786 = vadd.f32 %v777, %v369
    %v787 = vmul.f32 %v785, %v786
    %v788 = vadd.f32 %v701, %v787
    %v789 = vtanh.pop %v788
    %v790 = vsub.f32 1.0, %v785
    %792 = vrot.lane.b32.xlu0 %v789, 64
    %v793 = vpop.permute.xlu0 %792
    %v795 = vmul.f32 %v790, %v793
    %v797 = vmul.f32 %v785, %v703
    %v798 = vadd.f32 %v795, %v797
    %800 = vrot.lane.b32.xlu0 %v798, 64
    %v801 = vpop.permute.xlu0 %800
    %v802 = vsel %vm283, %v801, 0
    %804 = vmatprep.subr.mxu0 %v259
    %805 = vmatpush1.msra.mxu0 %v258
    %806 = vmatprep.subr.mxu0 %v261
    %807 = vmatpush1.msra.mxu0 %v260
    %808 = vmatprep.subr.mxu0 %v263
    %809 = vmatpush1.msra.mxu0 %v262
    %810 = vmatprep.subr.mxu0 %v265
    %811 = vmatpush1.msra.mxu0 %v264
    %812 = vmatprep.subr.mxu0 %v267
    %813 = vmatpush1.msra.mxu0 %v266
    %814 = vmatprep.subr.mxu0 %v269
    %815 = vmatpush1.msra.mxu0 %v268
    %816 = vmatprep.subr.mxu0 %v271
    %817 = vmatpush1.msra.mxu0 %v270
    %818 = vmatprep.subr.mxu0 %v273
    %819 = vmatpush1.msra.mxu0 %v272
    %820 = vmatprep.subr.mxu0 0.0
    %821 = vmatpush1.msra.mxu0 0.0
    %822 = vmatprep.subr.mxu0 0.0
    %823 = vmatpush1.msra.mxu0 0.0
    %824 = vmatprep.subr.mxu0 0.0
    %825 = vmatpush1.msra.mxu0 0.0
    %826 = vmatprep.subr.mxu0 0.0
    %827 = vmatpush1.msra.mxu0 0.0
    %828 = vmatprep.subr.mxu0 0.0
    %829 = vmatpush1.msra.mxu0 0.0
    %830 = vmatprep.subr.mxu0 0.0
    %831 = vmatpush1.msra.mxu0 0.0
    %832 = vmatprep.subr.mxu0 0.0
    %833 = vmatpush1.msra.mxu0 0.0
    %834 = vmatprep.subr.mxu0 0.0
    %835 = vmatpush1.msra.mxu0 0.0
    %836 = vmatprep.subr.mxu0 0.0
    %837 = vmatpush1.msra.mxu0 0.0
    %838 = vmatprep.subr.mxu0 0.0
    %839 = vmatpush1.msra.mxu0 0.0
    %840 = vmatprep.subr.mxu0 0.0
    %841 = vmatpush1.msra.mxu0 0.0
    %842 = vmatprep.subr.mxu0 0.0
    %843 = vmatpush1.msra.mxu0 0.0
    %844 = vmatprep.subr.mxu0 0.0
    %845 = vmatpush1.msra.mxu0 0.0
    %846 = vmatprep.subr.mxu0 0.0
    %847 = vmatpush1.msra.mxu0 0.0
    %848 = vmatprep.subr.mxu0 0.0
    %849 = vmatpush1.msra.mxu0 0.0
    %850 = vmatprep.subr.mxu0 0.0
    %851 = vmatpush1.msra.mxu0 0.0
    %852 = vmatprep.subr.mxu0 0.0
    %853 = vmatpush1.msra.mxu0 0.0
    %854 = vmatprep.subr.mxu0 0.0
    %855 = vmatpush1.msra.mxu0 0.0
    %856 = vmatprep.subr.mxu0 0.0
    %857 = vmatpush1.msra.mxu0 0.0
    %858 = vmatprep.subr.mxu0 0.0
    %859 = vmatpush1.msra.mxu0 0.0
    %860 = vmatprep.subr.mxu0 0.0
    %861 = vmatpush1.msra.mxu0 0.0
    %862 = vmatprep.subr.mxu0 0.0
    %863 = vmatpush1.msra.mxu0 0.0
    %864 = vmatprep.subr.mxu0 0.0
    %865 = vmatpush1.msra.mxu0 0.0
    %866 = vmatprep.subr.mxu0 0.0
    %867 = vmatpush1.msra.mxu0 0.0
    %868 = vmatprep.mubr.f32.mxu0 0.0
    %869 = vmatmul.mubr.f32.gmra.mrb[0].mxu0 %v802
    %v870 = vpop.f32.mrb[0].mxu0
    %v871 = vadd.f32 0.0, %v870
    %v872 = vpop.f32.mrb[0].mxu0
    %v873 = vadd.f32 0.0, %v872
    %874 = vdwg.mxu0
    %v876 = vrot.slane %v871, 4
    %v878 = vadd.f32 %v700, %v876
    %v879 = vxor.u32 %v878, 2147483648
    %v880 = vmul.f32 %v879, 1.442695
    %v881 = vpow.pop %v880
    %v882 = vadd.f32 %v881, 1.0
    %v883 = vrcp.pop %v882
    %v884 = vmul.f32 1.0, %v883
    %v885 = vadd.f32 %v873, %v369
    %v887 = vrot.slane %v885, 4
    %v889 = vmul.f32 %v884, %v887
    %v890 = vadd.f32 %v701, %v889
    %v891 = vtanh.pop %v890
    %v892 = vsub.f32 1.0, %v884
    %894 = vrot.lane.b32.xlu0 %v891, 64
    %v895 = vpop.permute.xlu0 %894
    %v897 = vmul.f32 %v892, %v895
    %v898 = vrot.slane %v798, 4
    %v900 = vmul.f32 %v884, %v898
    %v901 = vadd.f32 %v897, %v900
    %v904 = vrot.slane %v206, 4
    %v905 = vrot.slane %v208, 4
    %v908 = vsel %vm255, %v224, %v904
    %v909 = vsel %vm256, %v226, %v905
    %v911 = vrot.slane %v901, 4
    %912 = vrot.lane.b32.xlu0 %v911, 64
    %v913 = vpop.permute.xlu0 %912
    %v914 = vsel %vm283, %v913, 0
    %916 = vmatprep.subr.mxu0 %v259
    %917 = vmatpush1.msra.mxu0 %v258
    %918 = vmatprep.subr.mxu0 %v261
    %919 = vmatpush1.msra.mxu0 %v260
    %920 = vmatprep.subr.mxu0 %v263
    %921 = vmatpush1.msra.mxu0 %v262
    %922 = vmatprep.subr.mxu0 %v265
    %923 = vmatpush1.msra.mxu0 %v264
    %924 = vmatprep.subr.mxu0 %v267
    %925 = vmatpush1.msra.mxu0 %v266
    %926 = vmatprep.subr.mxu0 %v269
    %927 = vmatpush1.msra.mxu0 %v268
    %928 = vmatprep.subr.mxu0 %v271
    %929 = vmatpush1.msra.mxu0 %v270
    %930 = vmatprep.subr.mxu0 %v273
    %931 = vmatpush1.msra.mxu0 %v272
    %932 = vmatprep.subr.mxu0 0.0
    %933 = vmatpush1.msra.mxu0 0.0
    %934 = vmatprep.subr.mxu0 0.0
    %935 = vmatpush1.msra.mxu0 0.0
    %936 = vmatprep.subr.mxu0 0.0
    %937 = vmatpush1.msra.mxu0 0.0
    %938 = vmatprep.subr.mxu0 0.0
    %939 = vmatpush1.msra.mxu0 0.0
    %940 = vmatprep.subr.mxu0 0.0
    %941 = vmatpush1.msra.mxu0 0.0
    %942 = vmatprep.subr.mxu0 0.0
    %943 = vmatpush1.msra.mxu0 0.0
    %944 = vmatprep.subr.mxu0 0.0
    %945 = vmatpush1.msra.mxu0 0.0
    %946 = vmatprep.subr.mxu0 0.0
    %947 = vmatpush1.msra.mxu0 0.0
    %948 = vmatprep.subr.mxu0 0.0
    %949 = vmatpush1.msra.mxu0 0.0
    %950 = vmatprep.subr.mxu0 0.0
    %951 = vmatpush1.msra.mxu0 0.0
    %952 = vmatprep.subr.mxu0 0.0
    %953 = vmatpush1.msra.mxu0 0.0
    %954 = vmatprep.subr.mxu0 0.0
    %955 = vmatpush1.msra.mxu0 0.0
    %956 = vmatprep.subr.mxu0 0.0
    %957 = vmatpush1.msra.mxu0 0.0
    %958 = vmatprep.subr.mxu0 0.0
    %959 = vmatpush1.msra.mxu0 0.0
    %960 = vmatprep.subr.mxu0 0.0
    %961 = vmatpush1.msra.mxu0 0.0
    %962 = vmatprep.subr.mxu0 0.0
    %963 = vmatpush1.msra.mxu0 0.0
    %964 = vmatprep.subr.mxu0 0.0
    %965 = vmatpush1.msra.mxu0 0.0
    %966 = vmatprep.subr.mxu0 0.0
    %967 = vmatpush1.msra.mxu0 0.0
    %968 = vmatprep.subr.mxu0 0.0
    %969 = vmatpush1.msra.mxu0 0.0
    %970 = vmatprep.subr.mxu0 0.0
    %971 = vmatpush1.msra.mxu0 0.0
    %972 = vmatprep.subr.mxu0 0.0
    %973 = vmatpush1.msra.mxu0 0.0
    %974 = vmatprep.subr.mxu0 0.0
    %975 = vmatpush1.msra.mxu0 0.0
    %976 = vmatprep.subr.mxu0 0.0
    %977 = vmatpush1.msra.mxu0 0.0
    %978 = vmatprep.subr.mxu0 0.0
    %979 = vmatpush1.msra.mxu0 0.0
    %980 = vmatprep.mubr.f32.mxu0 0.0
    %981 = vmatmul.mubr.f32.gmra.mrb[0].mxu0 %v914
    %v982 = vpop.f32.mrb[0].mxu0
    %v983 = vadd.f32 0.0, %v982
    %v984 = vpop.f32.mrb[0].mxu0
    %v985 = vadd.f32 0.0, %v984
    %986 = vdwg.mxu0
    %v987 = vadd.f32 %v908, %v983
    %v988 = vxor.u32 %v987, 2147483648
    %v989 = vmul.f32 %v988, 1.442695
    %v990 = vpow.pop %v989
    %v991 = vadd.f32 %v990, 1.0
    %v992 = vrcp.pop %v991
    %v993 = vmul.f32 1.0, %v992
    %v994 = vadd.f32 %v985, %v369
    %v995 = vmul.f32 %v993, %v994
    %v996 = vadd.f32 %v909, %v995
    %v997 = vtanh.pop %v996
    %v998 = vsub.f32 1.0, %v993
    %1000 = vrot.lane.b32.xlu0 %v997, 64
    %v1001 = vpop.permute.xlu0 %1000
    %v1003 = vmul.f32 %v998, %v1001
    %v1005 = vmul.f32 %v993, %v911
    %v1006 = vadd.f32 %v1003, %v1005
    %1008 = vrot.lane.b32.xlu0 %v1006, 64
    %v1009 = vpop.permute.xlu0 %1008
    %v1010 = vsel %vm283, %v1009, 0
    %1012 = vmatprep.subr.mxu0 %v259
    %1013 = vmatpush1.msra.mxu0 %v258
    %1014 = vmatprep.subr.mxu0 %v261
    %1015 = vmatpush1.msra.mxu0 %v260
    %1016 = vmatprep.subr.mxu0 %v263
    %1017 = vmatpush1.msra.mxu0 %v262
    %1018 = vmatprep.subr.mxu0 %v265
    %1019 = vmatpush1.msra.mxu0 %v264
    %1020 = vmatprep.subr.mxu0 %v267
    %1021 = vmatpush1.msra.mxu0 %v266
    %1022 = vmatprep.subr.mxu0 %v269
    %1023 = vmatpush1.msra.mxu0 %v268
    %1024 = vmatprep.subr.mxu0 %v271
    %1025 = vmatpush1.msra.mxu0 %v270
    %1026 = vmatprep.subr.mxu0 %v273
    %1027 = vmatpush1.msra.mxu0 %v272
    %1028 = vmatprep.subr.mxu0 0.0
    %1029 = vmatpush1.msra.mxu0 0.0
    %1030 = vmatprep.subr.mxu0 0.0
    %1031 = vmatpush1.msra.mxu0 0.0
    %1032 = vmatprep.subr.mxu0 0.0
    %1033 = vmatpush1.msra.mxu0 0.0
    %1034 = vmatprep.subr.mxu0 0.0
    %1035 = vmatpush1.msra.mxu0 0.0
    %1036 = vmatprep.subr.mxu0 0.0
    %1037 = vmatpush1.msra.mxu0 0.0
    %1038 = vmatprep.subr.mxu0 0.0
    %1039 = vmatpush1.msra.mxu0 0.0
    %1040 = vmatprep.subr.mxu0 0.0
    %1041 = vmatpush1.msra.mxu0 0.0
    %1042 = vmatprep.subr.mxu0 0.0
    %1043 = vmatpush1.msra.mxu0 0.0
    %1044 = vmatprep.subr.mxu0 0.0
    %1045 = vmatpush1.msra.mxu0 0.0
    %1046 = vmatprep.subr.mxu0 0.0
    %1047 = vmatpush1.msra.mxu0 0.0
    %1048 = vmatprep.subr.mxu0 0.0
    %1049 = vmatpush1.msra.mxu0 0.0
    %1050 = vmatprep.subr.mxu0 0.0
    %1051 = vmatpush1.msra.mxu0 0.0
    %1052 = vmatprep.subr.mxu0 0.0
    %1053 = vmatpush1.msra.mxu0 0.0
    %1054 = vmatprep.subr.mxu0 0.0
    %1055 = vmatpush1.msra.mxu0 0.0
    %1056 = vmatprep.subr.mxu0 0.0
    %1057 = vmatpush1.msra.mxu0 0.0
    %1058 = vmatprep.subr.mxu0 0.0
    %1059 = vmatpush1.msra.mxu0 0.0
    %1060 = vmatprep.subr.mxu0 0.0
    %1061 = vmatpush1.msra.mxu0 0.0
    %1062 = vmatprep.subr.mxu0 0.0
    %1063 = vmatpush1.msra.mxu0 0.0
    %1064 = vmatprep.subr.mxu0 0.0
    %1065 = vmatpush1.msra.mxu0 0.0
    %1066 = vmatprep.subr.mxu0 0.0
    %1067 = vmatpush1.msra.mxu0 0.0
    %1068 = vmatprep.subr.mxu0 0.0
    %1069 = vmatpush1.msra.mxu0 0.0
    %1070 = vmatprep.subr.mxu0 0.0
    %1071 = vmatpush1.msra.mxu0 0.0
    %1072 = vmatprep.subr.mxu0 0.0
    %1073 = vmatpush1.msra.mxu0 0.0
    %1074 = vmatprep.subr.mxu0 0.0
    %1075 = vmatpush1.msra.mxu0 0.0
    %1076 = vmatprep.mubr.f32.mxu0 0.0
    %1077 = vmatmul.mubr.f32.gmra.mrb[0].mxu0 %v1010
    %v1078 = vpop.f32.mrb[0].mxu0
    %v1079 = vadd.f32 0.0, %v1078
    %v1080 = vpop.f32.mrb[0].mxu0
    %v1081 = vadd.f32 0.0, %v1080
    %1082 = vdwg.mxu0
    %v1084 = vrot.slane %v1079, 4
    %v1086 = vadd.f32 %v908, %v1084
    %v1087 = vxor.u32 %v1086, 2147483648
    %v1088 = vmul.f32 %v1087, 1.442695
    %v1089 = vpow.pop %v1088
    %v1090 = vadd.f32 %v1089, 1.0
    %v1091 = vrcp.pop %v1090
    %v1092 = vmul.f32 1.0, %v1091
    %v1093 = vadd.f32 %v1081, %v369
    %v1095 = vrot.slane %v1093, 4
    %v1097 = vmul.f32 %v1092, %v1095
    %v1098 = vadd.f32 %v909, %v1097
    %v1099 = vtanh.pop %v1098
    %v1100 = vsub.f32 1.0, %v1092
    %1102 = vrot.lane.b32.xlu0 %v1099, 64
    %v1103 = vpop.permute.xlu0 %1102
    %v1105 = vmul.f32 %v1100, %v1103
    %v1106 = vrot.slane %v1006, 4
    %v1108 = vmul.f32 %v1092, %v1106
    %v1109 = vadd.f32 %v1105, %v1108
    %1111 = vrot.lane.b32.xlu0 %v1109, 64
    %v1112 = vpop.permute.xlu0 %1111
    %vm1114 = vcmask 261124
    %1115 = vst.msk [vmem:[#allocation12 - $0x4] sm:$0xf0] %vm1114, %v1112
    %1116 = vrot.lane.b32.xlu0 %v1109, 32
    %v1117 = vpop.permute.xlu0 %1116
    %s1119 = scalar_lea.vmem [#allocation12], 4
    %1120 = vst.msk [vmem:[%s1119 - $0x4] sm:$0xf0] %vm1114, %v1117
    %v1122 = vrot.slane %v1109, 4
    %1123 = vrot.lane.b32.xlu0 %v1122, 64
    %v1124 = vpop.permute.xlu0 %1123
    %v1126 = vsel %vm257, %v385, %v1124
    %v1129 = vsel %vm257, %v497, %v1009
    %v1132 = vsel %vm257, %v593, %v913
    %v1135 = vsel %vm257, %v705, %v801
    %v1136 = vsel %vm257, %v801, %v705
    %v1137 = vsel %vm257, %v913, %v593
    %v1138 = vsel %vm257, %v1009, %v497
    %v1139 = vsel %vm257, %v1124, %v385
    %v1141 = vrot.slane %v1129, 4
    %v1144 = vrot.slane %v1135, 4
    %v1147 = vrot.slane %v1137, 4
    %v1150 = vrot.slane %v1139, 4
    %vm1152 = vcmask 1043456
    %v1153 = vsel %vm1152, %v1126, %v1141
    %v1154 = vsel %vm1152, %v1132, %v1144
    %v1155 = vsel %vm1152, %v1136, %v1147
    %v1156 = vsel %vm1152, %v1138, %v1150
    %v1157 = vld [vmem:[#allocation8] sm:$0xff]
    %v1158 = vld [vmem:[#allocation8 + $0x8] sm:$0xff]
    %v1159 = vld [vmem:[#allocation8 + $0x10] sm:$0xff]
    %v1160 = vld [vmem:[#allocation8 + $0x18] sm:$0xff]
    %v1161 = vld [vmem:[#allocation8 + $0x20] sm:$0xff]
    %v1162 = vld [vmem:[#allocation8 + $0x28] sm:$0xff]
    %v1163 = vld [vmem:[#allocation8 + $0x30] sm:$0xff]
    %v1164 = vld [vmem:[#allocation8 + $0x38] sm:$0xff]
    %v1165 = vld [vmem:[%s6] sm:$0x1]
    %v1167 = vlaneseq
    %v1168 = vshrl.u32 %v1167, 7
    %v1169 = vsub.s32 0, %v1168
    %v1170 = vrot.slane %v1165, %v1169
    %v1173 = vsel %vm283, %v1153, 0
    %v1176 = vsel %vm283, %v1154, 0
    %v1179 = vsel %vm283, %v1155, 0
    %v1182 = vsel %vm283, %v1156, 0
    %1184 = vmatprep.subr.mxu0 0.0
    %1185 = vmatpush1.msra.mxu0 %v1157
    %1186 = vmatprep.subr.mxu0 0.0
    %1187 = vmatpush1.msra.mxu0 %v1158
    %1188 = vmatprep.subr.mxu0 0.0
    %1189 = vmatpush1.msra.mxu0 %v1159
    %1190 = vmatprep.subr.mxu0 0.0
    %1191 = vmatpush1.msra.mxu0 %v1160
    %1192 = vmatprep.subr.mxu0 0.0
    %1193 = vmatpush1.msra.mxu0 %v1161
    %1194 = vmatprep.subr.mxu0 0.0
    %1195 = vmatpush1.msra.mxu0 %v1162
    %1196 = vmatprep.subr.mxu0 0.0
    %1197 = vmatpush1.msra.mxu0 %v1163
    %1198 = vmatprep.subr.mxu0 0.0
    %1199 = vmatpush1.msra.mxu0 %v1164
    %1200 = vmatprep.subr.mxu0 0.0
    %1201 = vmatpush1.msra.mxu0 0.0
    %1202 = vmatprep.subr.mxu0 0.0
    %1203 = vmatpush1.msra.mxu0 0.0
    %1204 = vmatprep.subr.mxu0 0.0
    %1205 = vmatpush1.msra.mxu0 0.0
    %1206 = vmatprep.subr.mxu0 0.0
    %1207 = vmatpush1.msra.mxu0 0.0
    %1208 = vmatprep.subr.mxu0 0.0
    %1209 = vmatpush1.msra.mxu0 0.0
    %1210 = vmatprep.subr.mxu0 0.0
    %1211 = vmatpush1.msra.mxu0 0.0
    %1212 = vmatprep.subr.mxu0 0.0
    %1213 = vmatpush1.msra.mxu0 0.0
    %1214 = vmatprep.subr.mxu0 0.0
    %1215 = vmatpush1.msra.mxu0 0.0
    %1216 = vmatprep.subr.mxu0 0.0
    %1217 = vmatpush1.msra.mxu0 0.0
    %1218 = vmatprep.subr.mxu0 0.0
    %1219 = vmatpush1.msra.mxu0 0.0
    %1220 = vmatprep.subr.mxu0 0.0
    %1221 = vmatpush1.msra.mxu0 0.0
    %1222 = vmatprep.subr.mxu0 0.0
    %1223 = vmatpush1.msra.mxu0 0.0
    %1224 = vmatprep.subr.mxu0 0.0
    %1225 = vmatpush1.msra.mxu0 0.0
    %1226 = vmatprep.subr.mxu0 0.0
    %1227 = vmatpush1.msra.mxu0 0.0
    %1228 = vmatprep.subr.mxu0 0.0
    %1229 = vmatpush1.msra.mxu0 0.0
    %1230 = vmatprep.subr.mxu0 0.0
    %1231 = vmatpush1.msra.mxu0 0.0
    %1232 = vmatprep.subr.mxu0 0.0
    %1233 = vmatpush1.msra.mxu0 0.0
    %1234 = vmatprep.subr.mxu0 0.0
    %1235 = vmatpush1.msra.mxu0 0.0
    %1236 = vmatprep.subr.mxu0 0.0
    %1237 = vmatpush1.msra.mxu0 0.0
    %1238 = vmatprep.subr.mxu0 0.0
    %1239 = vmatpush1.msra.mxu0 0.0
    %1240 = vmatprep.subr.mxu0 0.0
    %1241 = vmatpush1.msra.mxu0 0.0
    %1242 = vmatprep.subr.mxu0 0.0
    %1243 = vmatpush1.msra.mxu0 0.0
    %1244 = vmatprep.subr.mxu0 0.0
    %1245 = vmatpush1.msra.mxu0 0.0
    %1246 = vmatprep.subr.mxu0 0.0
    %1247 = vmatpush1.msra.mxu0 0.0
    %1248 = vmatprep.mubr.f32.mxu0 0.0
    %1249 = vmatmul.mubr.f32.gmra.mrb[0].mxu0 %v1173
    %v1250 = vpop.f32.mrb[0].mxu0
    %v1251 = vadd.f32 %v1170, %v1250
    %v1252 = vpop.f32.mrb[0].mxu0
    %1253 = vmatprep.mubr.f32.mxu0 0.0
    %1254 = vmatmul.mubr.f32.gmra.mrb[0].mxu0 %v1176
    %v1255 = vpop.f32.mrb[0].mxu0
    %v1256 = vadd.f32 %v1170, %v1255
    %v1257 = vpop.f32.mrb[0].mxu0
    %1258 = vmatprep.mubr.f32.mxu0 0.0
    %1259 = vmatmul.mubr.f32.gmra.mrb[0].mxu0 %v1179
    %v1260 = vpop.f32.mrb[0].mxu0
    %v1261 = vadd.f32 %v1170, %v1260
    %v1262 = vpop.f32.mrb[0].mxu0
    %1263 = vmatprep.mubr.f32.mxu0 0.0
    %1264 = vmatmul.mubr.f32.gmra.mrb[0].mxu0 %v1182
    %v1265 = vpop.f32.mrb[0].mxu0
    %v1266 = vadd.f32 %v1170, %v1265
    %v1267 = vpop.f32.mrb[0].mxu0
    %1268 = vdwg.mxu0
    %v1269 = vtanh.pop %v1251
    %v1270 = vtanh.pop %v1256
    %v1271 = vtanh.pop %v1261
    %v1272 = vtanh.pop %v1266
    %v1273 = vld [vmem:[#allocation10] sm:$0xff]
    %v1274 = vld [vmem:[#allocation10 + $0x8] sm:$0xff]
    %v1275 = vld [vmem:[#allocation10 + $0x10] sm:$0xff]
    %v1276 = vld [vmem:[#allocation10 + $0x18] sm:$0xff]
    %v1277 = vld [vmem:[#allocation10 + $0x20] sm:$0xff]
    %v1278 = vld [vmem:[#allocation10 + $0x28] sm:$0xff]
    %v1279 = vld [vmem:[#allocation10 + $0x30] sm:$0xff]
    %v1280 = vld [vmem:[#allocation10 + $0x38] sm:$0xff]
    %v1282 = vsel %vm283, %v1269, 0
    %v1285 = vsel %vm283, %v1270, 0
    %v1288 = vsel %vm283, %v1271, 0
    %v1291 = vsel %vm283, %v1272, 0
    %1293 = vmatprep.subr.mxu0 0.0
    %1294 = vmatpush1.msra.mxu0 %v1273
    %1295 = vmatprep.subr.mxu0 0.0
    %1296 = vmatpush1.msra.mxu0 %v1274
    %1297 = vmatprep.subr.mxu0 0.0
    %1298 = vmatpush1.msra.mxu0 %v1275
    %1299 = vmatprep.subr.mxu0 0.0
    %1300 = vmatpush1.msra.mxu0 %v1276
    %1301 = vmatprep.subr.mxu0 0.0
    %1302 = vmatpush1.msra.mxu0 %v1277
    %1303 = vmatprep.subr.mxu0 0.0
    %1304 = vmatpush1.msra.mxu0 %v1278
    %1305 = vmatprep.subr.mxu0 0.0
    %1306 = vmatpush1.msra.mxu0 %v1279
    %1307 = vmatprep.subr.mxu0 0.0
    %1308 = vmatpush1.msra.mxu0 %v1280
    %1309 = vmatprep.subr.mxu0 0.0
    %1310 = vmatpush1.msra.mxu0 0.0
    %1311 = vmatprep.subr.mxu0 0.0
    %1312 = vmatpush1.msra.mxu0 0.0
    %1313 = vmatprep.subr.mxu0 0.0
    %1314 = vmatpush1.msra.mxu0 0.0
    %1315 = vmatprep.subr.mxu0 0.0
    %1316 = vmatpush1.msra.mxu0 0.0
    %1317 = vmatprep.subr.mxu0 0.0
    %1318 = vmatpush1.msra.mxu0 0.0
    %1319 = vmatprep.subr.mxu0 0.0
    %1320 = vmatpush1.msra.mxu0 0.0
    %1321 = vmatprep.subr.mxu0 0.0
    %1322 = vmatpush1.msra.mxu0 0.0
    %1323 = vmatprep.subr.mxu0 0.0
    %1324 = vmatpush1.msra.mxu0 0.0
    %1325 = vmatprep.subr.mxu0 0.0
    %1326 = vmatpush1.msra.mxu0 0.0
    %1327 = vmatprep.subr.mxu0 0.0
    %1328 = vmatpush1.msra.mxu0 0.0
    %1329 = vmatprep.subr.mxu0 0.0
    %1330 = vmatpush1.msra.mxu0 0.0
    %1331 = vmatprep.subr.mxu0 0.0
    %1332 = vmatpush1.msra.mxu0 0.0
    %1333 = vmatprep.subr.mxu0 0.0
    %1334 = vmatpush1.msra.mxu0 0.0
    %1335 = vmatprep.subr.mxu0 0.0
    %1336 = vmatpush1.msra.mxu0 0.0
    %1337 = vmatprep.subr.mxu0 0.0
    %1338 = vmatpush1.msra.mxu0 0.0
    %1339 = vmatprep.subr.mxu0 0.0
    %1340 = vmatpush1.msra.mxu0 0.0
    %1341 = vmatprep.subr.mxu0 0.0
    %1342 = vmatpush1.msra.mxu0 0.0
    %1343 = vmatprep.subr.mxu0 0.0
    %1344 = vmatpush1.msra.mxu0 0.0
    %1345 = vmatprep.subr.mxu0 0.0
    %1346 = vmatpush1.msra.mxu0 0.0
    %1347 = vmatprep.subr.mxu0 0.0
    %1348 = vmatpush1.msra.mxu0 0.0
    %1349 = vmatprep.subr.mxu0 0.0
    %1350 = vmatpush1.msra.mxu0 0.0
    %1351 = vmatprep.subr.mxu0 0.0
    %1352 = vmatpush1.msra.mxu0 0.0
    %1353 = vmatprep.subr.mxu0 0.0
    %1354 = vmatpush1.msra.mxu0 0.0
    %1355 = vmatprep.subr.mxu0 0.0
    %1356 = vmatpush1.msra.mxu0 0.0
    %1357 = vmatprep.mubr.f32.mxu0 0.0
    %1358 = vmatmul.mubr.f32.gmra.mrb[0].mxu0 %v1282
    %v1359 = vpop.f32.mrb[0].mxu0
    %v1360 = vadd.f32 0.0, %v1359
    %v1361 = vpop.f32.mrb[0].mxu0
    %1362 = vmatprep.mubr.f32.mxu0 0.0
    %1363 = vmatmul.mubr.f32.gmra.mrb[0].mxu0 %v1285
    %v1364 = vpop.f32.mrb[0].mxu0
    %v1365 = vadd.f32 0.0, %v1364
    %v1366 = vpop.f32.mrb[0].mxu0
    %1367 = vmatprep.mubr.f32.mxu0 0.0
    %1368 = vmatmul.mubr.f32.gmra.mrb[0].mxu0 %v1288
    %v1369 = vpop.f32.mrb[0].mxu0
    %v1370 = vadd.f32 0.0, %v1369
    %v1371 = vpop.f32.mrb[0].mxu0
    %1372 = vmatprep.mubr.f32.mxu0 0.0
    %1373 = vmatmul.mubr.f32.gmra.mrb[0].mxu0 %v1291
    %v1374 = vpop.f32.mrb[0].mxu0
    %v1375 = vadd.f32 0.0, %v1374
    %v1376 = vpop.f32.mrb[0].mxu0
    %1377 = vdwg.mxu0
    %v1382 = vcombine.high %v1360, %v1360
    %v1383 = vcombine.high %v1365, %v1365
    %v1384 = vcombine.high %v1370, %v1370
    %v1385 = vcombine.high %v1375, %v1375
    %v1390 = vcombine.high %v1153, %v1153
    %v1391 = vcombine.high %v1154, %v1154
    %v1392 = vcombine.high %v1155, %v1155
    %v1393 = vcombine.high %v1156, %v1156
    %vm1398 = vcmask 519168
    %v1399 = vsel %vm1398, %v1360, -inf
    %v1400 = vsel %vm1398, %v1382, -inf
    %v1401 = vsel %vm1398, %v1365, -inf
    %v1402 = vsel %vm1398, %v1383, -inf
    %v1403 = vsel %vm1398, %v1370, -inf
    %v1404 = vmax.f32 %v1399, %v1403
    %v1405 = vsel %vm1398, %v1384, -inf
    %v1406 = vmax.f32 %v1400, %v1405
    %v1407 = vsel %vm1398, %v1375, -inf
    %v1408 = vmax.f32 %v1401, %v1407
    %v1409 = vsel %vm1398, %v1385, -inf
    %v1410 = vmax.f32 %v1402, %v1409
    %v1411 = vmax.f32 %v1404, %v1406
    %v1412 = vmax.f32 %v1408, %v1410
    %v1413 = vmax.f32 %v1411, %v1412
    %v1414 = vsub.f32 %v1360, %v1413
    %v1415 = vsub.f32 %v1382, %v1413
    %v1416 = vsub.f32 %v1365, %v1413
    %v1417 = vsub.f32 %v1383, %v1413
    %v1418 = vsub.f32 %v1370, %v1413
    %v1419 = vsub.f32 %v1384, %v1413
    %v1420 = vsub.f32 %v1375, %v1413
    %v1421 = vsub.f32 %v1385, %v1413
    %v1422 = vmul.f32 %v1414, 1.442695
    %v1423 = vpow.pop %v1422
    %v1424 = vmul.f32 %v1415, 1.442695
    %v1425 = vpow.pop %v1424
    %v1426 = vmul.f32 %v1416, 1.442695
    %v1427 = vpow.pop %v1426
    %v1428 = vmul.f32 %v1417, 1.442695
    %v1429 = vpow.pop %v1428
    %v1430 = vmul.f32 %v1418, 1.442695
    %v1431 = vpow.pop %v1430
    %v1432 = vmul.f32 %v1419, 1.442695
    %v1433 = vpow.pop %v1432
    %v1434 = vmul.f32 %v1420, 1.442695
    %v1435 = vpow.pop %v1434
    %v1436 = vmul.f32 %v1421, 1.442695
    %v1437 = vpow.pop %v1436
    %v1438 = vsel %vm1398, %v1423, 0.0
    %v1439 = vsel %vm1398, %v1425, 0.0
    %v1440 = vadd.f32 %v1438, %v1439
    %v1441 = vsel %vm1398, %v1427, 0.0
    %v1442 = vadd.f32 %v1440, %v1441
    %v1443 = vsel %vm1398, %v1429, 0.0
    %v1444 = vadd.f32 %v1442, %v1443
    %v1445 = vsel %vm1398, %v1431, 0.0
    %v1446 = vadd.f32 %v1444, %v1445
    %v1447 = vsel %vm1398, %v1433, 0.0
    %v1448 = vadd.f32 %v1446, %v1447
    %v1449 = vsel %vm1398, %v1435, 0.0
    %v1450 = vadd.f32 %v1448, %v1449
    %v1451 = vsel %vm1398, %v1437, 0.0
    %v1452 = vadd.f32 %v1450, %v1451
    %v1453 = vrcp.pop %v1452
    %v1454 = vmul.f32 %v1423, %v1453
    %v1455 = vmul.f32 %v1425, %v1453
    %v1456 = vmul.f32 %v1427, %v1453
    %v1457 = vmul.f32 %v1429, %v1453
    %v1458 = vmul.f32 %v1431, %v1453
    %v1459 = vmul.f32 %v1433, %v1453
    %v1460 = vmul.f32 %v1435, %v1453
    %v1461 = vmul.f32 %v1437, %v1453
    %1462 = vst.msk [vmem:[#allocation14] sm:$0xf] %vm1398, %v1454
    %1463 = vst.msk [vmem:[#allocation14 + $0x4] sm:$0xf] %vm1398, %v1455
    %1464 = vst.msk [vmem:[#allocation14 + $0x8] sm:$0xf] %vm1398, %v1456
    %1465 = vst.msk [vmem:[#allocation14 + $0xc] sm:$0xf] %vm1398, %v1457
    %1466 = vst.msk [vmem:[#allocation14 + $0x10] sm:$0xf] %vm1398, %v1458
    %1467 = vst.msk [vmem:[#allocation14 + $0x14] sm:$0xf] %vm1398, %v1459
    %1468 = vst.msk [vmem:[#allocation14 + $0x18] sm:$0xf] %vm1398, %v1460
    %1469 = vst.msk [vmem:[#allocation14 + $0x1c] sm:$0xf] %vm1398, %v1461
    %v1470 = vmul.f32 %v1454, %v1153
    %v1471 = vmul.f32 %v1455, %v1390
    %v1472 = vmul.f32 %v1456, %v1154
    %v1473 = vmul.f32 %v1457, %v1391
    %v1474 = vmul.f32 %v1458, %v1155
    %v1475 = vmul.f32 %v1459, %v1392
    %v1476 = vmul.f32 %v1460, %v1156
    %v1477 = vmul.f32 %v1461, %v1393
    %v1478 = vsel %vm1398, %v1470, 0.0
    %v1479 = vsel %vm1398, %v1471, 0.0
    %v1480 = vadd.f32 %v1478, %v1479
    %v1481 = vsel %vm1398, %v1472, 0.0
    %v1482 = vadd.f32 %v1480, %v1481
    %v1483 = vsel %vm1398, %v1473, 0.0
    %v1484 = vadd.f32 %v1482, %v1483
    %v1485 = vsel %vm1398, %v1474, 0.0
    %v1486 = vadd.f32 %v1484, %v1485
    %v1487 = vsel %vm1398, %v1475, 0.0
    %v1488 = vadd.f32 %v1486, %v1487
    %v1489 = vsel %vm1398, %v1476, 0.0
    %v1490 = vadd.f32 %v1488, %v1489
    %v1491 = vsel %vm1398, %v1477, 0.0
    %v1492 = vadd.f32 %v1490, %v1491
    %1493 = vst.msk [vmem:[#allocation11] sm:$0xf] %vm1398, %v1492
    // Predicated region
    $region54: #{tpu_custom_call.1} parent=1 // pred_check
      _
    $region55: #{tpu_custom_call.1} parent=1 // pred_check_branch
      %1495 = sbr.rel (0) target = $region57
    $region56: #{tpu_custom_call.1} parent=1 // pred_region
      %s1497 = ssub.s32 64, 64
      %1498 = vsyncadd [#allocation4], %s1497
      %s1500 = sshll.u32 [#allocation11], 4
      %s1501 = int_to_ptr.vmem [resolvable:$true] %s1500
      %1503 = dma.vmem_to_hbm [thread:$0]  %s1501, 64, %s8, [#allocation4]
    $region57: #{tpu_custom_call.1} parent=1 // pred_fallthru
      _
    // Predicated region
    $region58: #{tpu_custom_call.1} parent=1 // pred_check
      _
    $region59: #{tpu_custom_call.1} parent=1 // pred_check_branch
      %1505 = sbr.rel (0) target = $region61
    $region60: #{tpu_custom_call.1} parent=1 // pred_region
      %s1507 = ssub.s32 128, 128
      %1508 = vsyncadd [#allocation13], %s1507
      %s1509 = sshll.u32 [#allocation12], 4
      %s1510 = int_to_ptr.vmem [resolvable:$true] %s1509
      %1515 = dma.vmem_to_hbm [thread:$0]  %s1510, 128, %s9, [#allocation13], 64, 64, 4
    $region61: #{tpu_custom_call.1} parent=1 // pred_fallthru
      _
    // Predicated region
    $region62: #{tpu_custom_call.1} parent=1 // pred_check
      _
    $region63: #{tpu_custom_call.1} parent=1 // pred_check_branch
      %1517 = sbr.rel (0) target = $region65
    $region64: #{tpu_custom_call.1} parent=1 // pred_region
      %s1519 = ssub.s32 512, 512
      %1520 = vsyncadd [#allocation13], %s1519
      %s1521 = sshll.u32 [#allocation14], 4
      %s1522 = int_to_ptr.vmem [resolvable:$true] %s1521
      %1527 = dma.vmem_to_hbm [thread:$0]  %s1522, 512, %s10, [#allocation13], 64, 64, 4
    $region65: #{tpu_custom_call.1} parent=1 // pred_fallthru
      _
    // Predicated region
    $region66: #{tpu_custom_call.1} parent=1 // pred_check
      _
    $region67: #{tpu_custom_call.1} parent=1 // pred_check_branch
      %1529 = sbr.rel (0) target = $region69
    $region68: #{tpu_custom_call.1} parent=1 // pred_region
      %1530 = dma.done [#allocation4], 64
    $region69: #{tpu_custom_call.1} parent=1 // pred_fallthru
      _
    // Predicated region
    $region70: #{tpu_custom_call.1} parent=1 // pred_check
      _
    $region71: #{tpu_custom_call.1} parent=1 // pred_check_branch
      %1532 = sbr.rel (0) target = $region73
    $region72: #{tpu_custom_call.1} parent=1 // pred_region
      %1533 = dma.done [#allocation13], 128
    $region73: #{tpu_custom_call.1} parent=1 // pred_fallthru
      _
    // Predicated region
    $region74: #{tpu_custom_call.1} parent=1 // pred_check
      _
    $region75: #{tpu_custom_call.1} parent=1 // pred_check_branch
      %1535 = sbr.rel (0) target = $region77
    $region76: #{tpu_custom_call.1} parent=1 // pred_region
      %1536 = dma.done [#allocation13], 512
    $region77: #{tpu_custom_call.1} parent=1 // pred_fallthru
      _
    %1537 = vsyncpa [#allocation3], 1
    %1538 = vsyncpa [#allocation6], 1
    %1539 = vsyncpa [#allocation9], 1
    %1540 = vsyncpa [#allocation4], 1
    %1541 = vsyncpa [#allocation13], 1

</llo_original>
